<compile_context>
chip_gen: v7x
topology: tpu7x:2x2x1
jax: 0.10.0
libtpu: 0.0.40
codegen_flags: <defaults>
</compile_context>

<pallas_src>
import functools
import math

import jax
import jax.numpy as jnp
from jax.experimental import pallas as pl
from jax.experimental.pallas import tpu as pltpu

SCALE_FACTOR = 1.0 / 0.6

_TARGET_BLOCK_BYTES = 4 * 1024 * 1024      # ~4 MiB per block
_SMALL_INPUT_BYTES = 256 * 1024            # below this, plain JAX (fusable)
_VMEM_LIMIT_BYTES = 32 * 1024 * 1024
_LANE_CANDIDATES = (8192, 4096, 2048, 1024, 512, 256, 128)


def _scaled_silu_kernel(x_ref, o_ref, *, compute_dtype):
    x = x_ref[...].astype(compute_dtype)
    # sigmoid(x) = 0.5 * (tanh(x/2) + 1): a single EUP push per vreg (vs.
    # exp + reciprocal = 2), numerically stable across the full range, and the
    # VPU only sees cheap multiplies/adds -> kernel stays HBM-bound.
    sig = 0.5 * (jnp.tanh(0.5 * x) + 1.0)
    o_ref[...] = (x * SCALE_FACTOR * sig).astype(o_ref.dtype)


def _pre_v6_device() -> bool:
    try:
        kind = jax.devices()[0].device_kind.lower()
    except Exception:
        return False
    return any(tag in kind for tag in ("v2", "v3", "v4", "v5"))


def _compute_dtype_for(dtype):
    # v6e/v7x have bf16 VPU + EUP -> compute natively (half the vector work,
    # no pack/unpack casts).  Pre-v6 chips upcast to f32.
    if dtype == jnp.bfloat16 and not _pre_v6_device():
        return jnp.bfloat16
    return jnp.float32


def _sublane_align(dtype) -> int:
    # Sublane packing multiple: 8 (f32), 16 (bf16/f16), 32 (int8/fp8).
    return max(8, 32 // jnp.dtype(dtype).itemsize)


def _pick_block_rows(rows: int, cols: int, dtype) -> int:
    """Largest sublane-aligned row block near ~4 MiB, keeping grid length >= 2."""
    align = _sublane_align(dtype)
    itemsize = jnp.dtype(dtype).itemsize
    target_elems = max(_TARGET_BLOCK_BYTES // itemsize, align * 128)
    block_rows = target_elems // cols
    if block_rows >= rows:
        # Whole input fits in one block.  Still split into two blocks (when we
        # can keep sublane alignment) so the parallel grid has >= 2 steps and
        # both v7x TensorCores get work; ragged last block is masked by Pallas.
        if rows >= 2 * align:
            half = -(-((rows + 1) // 2) // align) * align
            return min(half, rows)
        return rows
    return max(align, (block_rows // align) * align)


def _run_2d(x2d):
    rows, cols = x2d.shape
    dtype = x2d.dtype
    block_rows = _pick_block_rows(rows, cols, dtype)
    grid = (pl.cdiv(rows, block_rows),)
    total = rows * cols
    itemsize = jnp.dtype(dtype).itemsize
    kernel = functools.partial(
        _scaled_silu_kernel, compute_dtype=_compute_dtype_for(dtype))
    # TODO(synk): sweep pipeline_mode=pl.Buffered(3) on the input BlockSpec on
    # v7x hardware (expected low single-digit % from hiding DMA issue latency).
    return pl.pallas_call(
        kernel,
        out_shape=jax.ShapeDtypeStruct((rows, cols), dtype),
        grid=grid,
        in_specs=[pl.BlockSpec((block_rows, cols), lambda i: (i, 0))],
        out_specs=pl.BlockSpec((block_rows, cols), lambda i: (i, 0)),
        compiler_params=pltpu.CompilerParams(
            # "parallel" lets the row-grid be sharded across both v7x
            # TensorCores; _pick_block_rows keeps grid length >= 2.
            dimension_semantics=("parallel",),
            vmem_limit_bytes=_VMEM_LIMIT_BYTES,
        ),
        cost_estimate=pl.CostEstimate(
            flops=4 * total,
            transcendentals=total,
            bytes_accessed=2 * total * itemsize,
        ),
    )(x2d)


def _run_flat(x_flat):
    """Run the kernel on a 1-D array whose length is a multiple of 128."""
    total = x_flat.shape[0]
    cols = 128
    for c in _LANE_CANDIDATES:
        if total % c == 0:
            cols = c
            break
    return _run_2d(x_flat.reshape(total // cols, cols)).reshape(total)


def scaled_silu(x):
    """ScaledSiLU applied elementwise; any float input shape/dtype."""
    orig_shape = x.shape
    total = math.prod(orig_shape) if orig_shape else 1
    if total == 0:
        return x

    nbytes = total * jnp.dtype(x.dtype).itemsize
    if nbytes < _SMALL_INPUT_BYTES or total < 128:
        # Tiny tensors: pallas_call launch overhead dominates and a standalone
        # kernel forbids producer/consumer fusion -> leave it to plain XLA.
        return (jax.nn.silu(x) * SCALE_FACTOR).astype(x.dtype)

    x_flat = jnp.reshape(x, (total,))
    if total % 128 == 0:
        # Fast path: free reshape to a lane-dense slab -> exactly one HBM read
        # + one HBM write inside the kernel.
        return _run_flat(x_flat).reshape(orig_shape)

    # Ragged path (element count not a multiple of 128): kernel on the
    # 128-aligned prefix, plain JAX on the <128-element tail.  Avoids the
    # whole-array pad + slice (which tripled HBM traffic).
    # TODO(synk): replace with an in-kernel masked tail store (scalar-prefetch
    # total + pltpu.store mask) to also remove the slice/concat copies.
    split = (total // 128) * 128
    head = _run_flat(x_flat[:split])
    tail = (jax.nn.silu(x_flat[split:]) * SCALE_FACTOR).astype(x.dtype)
    return jnp.concatenate([head, tail]).reshape(orig_shape)


if __name__ == "__main__":
    key = jax.random.PRNGKey(0)
    keys = jax.random.split(key, 6)

    cases = [
        # Tiny SchNet-style MLP activations -> plain-JAX escape hatch.
        (jax.random.normal(keys[0], (8, 32), dtype=jnp.float32), 2e-3, 2e-3),
        (jax.random.normal(keys[1], (16, 256), dtype=jnp.float32), 2e-3, 2e-3),
        # Larger f32 stream -> lane-dense Pallas fast path (grid >= 2 blocks).
        (jax.random.normal(keys[2], (512, 1024), dtype=jnp.float32), 2e-3, 2e-3),
        # Larger bf16 stream -> native-bf16 Pallas path on v6e/v7x.
        (jax.random.normal(keys[3], (256, 2048), dtype=jnp.bfloat16), 5e-2, 5e-2),
        # Larger ragged element count -> prefix through kernel, tail in JAX.
        (jax.random.normal(keys[4], (1031, 257), dtype=jnp.float32), 2e-3, 2e-3),
        # Tiny ragged -> escape hatch.
        (jax.random.normal(keys[5], (7, 9), dtype=jnp.float32), 2e-3, 2e-3),
    ]

    for x, atol, rtol in cases:
        out = jax.block_until_ready(scaled_silu(x))
        ref = jax.nn.silu(x.astype(jnp.float32)) * SCALE_FACTOR
        assert out.shape == x.shape and out.dtype == x.dtype
        err = float(jnp.max(jnp.abs(out.astype(jnp.float32) - ref)))
        assert jnp.allclose(out.astype(jnp.float32), ref, atol=atol, rtol=rtol), (
            x.shape, str(x.dtype), err)

    print("KERNEL_OK")
</pallas_src>

<mosaic_0001>
module attributes {stable_mosaic.version = 11 : i64} {
  func.func @_scaled_silu_kernel(%arg0: i32, %arg1: memref<32x8192xf32, #tpu.memory_space<vmem>>, %arg2: memref<32x8192xf32, #tpu.memory_space<vmem>>) attributes {dimension_semantics = [#tpu.dimension_semantics<parallel>], iteration_bounds = array<i64: 2>, scalar_prefetch = 0 : i64, scratch_operands = 0 : i64, tpu.core_type = #tpu.core_type<tc>, window_params = [{transform_indices = @transform_0, window_bounds = array<i64: 32, 8192>}, {transform_indices = @transform_1, window_bounds = array<i64: 32, 8192>}]} {
    %c0 = arith.constant 0 : index
    %c0_0 = arith.constant 0 : index
    %0 = vector.load %arg1[%c0, %c0_0] : memref<32x8192xf32, #tpu.memory_space<vmem>>, vector<32x8192xf32>
    %cst = arith.constant 5.000000e-01 : f32
    %1 = vector.broadcast %cst : f32 to vector<32x8192xf32>
    %2 = arith.mulf %1, %0 : vector<32x8192xf32>
    %3 = math.tanh %2 : vector<32x8192xf32>
    %cst_1 = arith.constant 1.000000e+00 : f32
    %4 = vector.broadcast %cst_1 : f32 to vector<32x8192xf32>
    %5 = arith.addf %3, %4 : vector<32x8192xf32>
    %cst_2 = arith.constant 5.000000e-01 : f32
    %6 = vector.broadcast %cst_2 : f32 to vector<32x8192xf32>
    %7 = arith.mulf %6, %5 : vector<32x8192xf32>
    %cst_3 = arith.constant 1.66666663 : f32
    %8 = vector.broadcast %cst_3 : f32 to vector<32x8192xf32>
    %9 = arith.mulf %0, %8 : vector<32x8192xf32>
    %10 = arith.mulf %9, %7 : vector<32x8192xf32>
    %c0_4 = arith.constant 0 : index
    %c0_5 = arith.constant 0 : index
    %11 = vector.load %arg2[%c0_4, %c0_5] : memref<32x8192xf32, #tpu.memory_space<vmem>>, vector<32x8192xf32>
    tpu.vector_store %arg2[%c0_4, %c0_5], %10 {strides = array<i32>} : memref<32x8192xf32, #tpu.memory_space<vmem>>, vector<32x8192xf32>,
    return
  }
  func.func @transform_0(%arg0: i32) -> (i32, i32) {
    %c0_i32 = arith.constant 0 : i32
    %c0_i32_0 = arith.constant 0 : i32
    return %arg0, %c0_i32 : i32, i32
  }
  func.func @transform_1(%arg0: i32) -> (i32, i32) {
    %c0_i32 = arith.constant 0 : i32
    %c0_i32_0 = arith.constant 0 : i32
    return %arg0, %c0_i32 : i32, i32
  }
}

</mosaic_0001>

<llo_original>
// kernel: tpu_custom_call.1
$region0: #{tpu_custom_call.1}
  #allocation0 [shape = 'u32[]', space=smem, size = 0x4, offset = 0x4, fixed_abs, tag = 'smem constant byte address 0x4 - core index']
  #allocation1 [shape = 'u32[144,128]{1,0:T(1,128)}', space=vmem, size = 0x12000, scoped, tag = 'internal scratch']
  %s0 = inlined_call_operand.hbm [shape: f32[64,8192], index: 0, kind: input, shape index: {}]
  %s1 = inlined_call_operand.hbm [shape: f32[64,8192], index: 1, kind: output, shape index: {}]
  %s2 = sld [smem:[#allocation0]]
  $region41: #{tpu_custom_call.1} parent=0
    _
  %s4 = ssub.s32 1, %s2
  %s5 = scalar_select 0, %s4, %s2
  $region1: #{tpu_custom_call.1} parent=0
    #allocation2 [shape = 'u8[2097152]{0}', space=vmem, size = 0x200000, scoped, tag = 'input window, operand 0']
    #allocation3 [shape = 's32[2]{0}', space=sflag, size = 0x8, scoped, tag = 'scoped memory for tpu_custom_call.1']
    #allocation4 [shape = 's32[2]{0}', space=sflag, size = 0x8, scoped, tag = 'scoped memory for tpu_custom_call.1']
    #allocation5 [shape = 'u8[2097152]{0}', space=vmem, size = 0x200000, scoped, tag = 'output window, operand 0']
    %6 = vsyncpa [#allocation3], 0
    %s7 = scalar_lea.sflag [#allocation3], 1
    %8 = vsyncpa %s7, 0
    %9 = vsyncpa [#allocation4], 0
    %s10 = scalar_lea.sflag [#allocation4], 1
    %11 = vsyncpa %s10, 0
    loop: start=0, step=1, limit=4
    $region2: #{tpu_custom_call.1} parent=1 // loop_pre_header
      _
    $region3: #{tpu_custom_call.1} parent=1 // loop_header
      %s13 = sphi 0, %s17
      %p14 = scmp.ge.s32.totalorder %s13, 4
      %s23 = sphi 0, %s25
      %s26 = sphi 0, %s23
      %s27 = sphi 0, %s26
      %s43 = sphi 0, %s27
      %s49 = sphi 0, %s51
      %s52 = sphi 0, %s49
      %s53 = sphi 0, %s52
      %s69 = sphi 0, %s53
    $region4: #{tpu_custom_call.1} parent=1 // loop_header_branch
      %16 = sbr.rel (%p14) target = $region8
    $region5: #{tpu_custom_call.1} parent=1 // loop_body
      %s18 = ssub.s32 %s13, 1
      %s19 = ssub.s32 %s13, 2
      %s20 = sadd.s32 %s13, 1
      %s21 = ssub.s32 %s13, %s20
      %p22 = scmp.eq.s32.totalorder %s21, 0
      %s24 = sadd.s32 %s23, 1
      %s25 = scalar_select %p22, %s23, %s24
      %p28 = pneg %p22
      %p29 = scmp.eq.s32.totalorder %s13, 1
      %p30 = por %p28, %p29
      %p31 = scmp.ne.s32.totalorder %s23, %s26
      %p32 = scmp.eq.s32.totalorder %s13, 0
      %p33 = por %p31, %p32
      %p34 = scmp.ne.s32.totalorder %s23, %s26
      %p35 = scmp.eq.s32.totalorder %s18, 1
      %p36 = por %p34, %p35
      %p37 = scmp.ne.s32.totalorder %s26, %s27
      %p38 = scmp.eq.s32.totalorder %s18, 0
      %p39 = por %p37, %p38
      %p40 = scmp.ne.s32.totalorder %s26, %s27
      %p41 = scmp.eq.s32.totalorder %s19, 1
      %p42 = por %p40, %p41
      %p44 = scmp.ne.s32.totalorder %s27, %s43
      %p45 = scmp.eq.s32.totalorder %s19, 0
      %p46 = por %p44, %p45
      %s47 = ssub.s32 %s13, %s20
      %p48 = scmp.eq.s32.totalorder %s47, 0
      %s50 = sadd.s32 %s49, 1
      %s51 = scalar_select %p48, %s49, %s50
      %p54 = pneg %p48
      %p55 = scmp.eq.s32.totalorder %s13, 1
      %p56 = por %p54, %p55
      %p57 = scmp.ne.s32.totalorder %s49, %s52
      %p58 = scmp.eq.s32.totalorder %s13, 0
      %p59 = por %p57, %p58
      %p60 = scmp.ne.s32.totalorder %s49, %s52
      %p61 = scmp.eq.s32.totalorder %s18, 1
      %p62 = por %p60, %p61
      %p63 = scmp.ne.s32.totalorder %s52, %s53
      %p64 = scmp.eq.s32.totalorder %s18, 0
      %p65 = por %p63, %p64
      %p66 = scmp.ne.s32.totalorder %s52, %s53
      %p67 = scmp.eq.s32.totalorder %s19, 1
      %p68 = por %p66, %p67
      %p70 = scmp.ne.s32.totalorder %s53, %s69
      %p71 = scmp.eq.s32.totalorder %s19, 0
      %p72 = por %p70, %p71
      %p73 = scmp.le.s32.totalorder 1, %s13
      %p74 = scmp.lt.s32.totalorder %s13, 3
      %p75 = pnand %p73, %p74
      %p76 = pneg %p75
      // Predicated region
      $region9: #{tpu_custom_call.1} parent=5 // pred_check
        _
      $region10: #{tpu_custom_call.1} parent=5 // pred_check_branch
        %78 = sbr.rel (%p75) target = $region12
      $region11: #{tpu_custom_call.1} parent=5 // pred_region
        %s79 = ssub.s32 %s13, 1
      $region12: #{tpu_custom_call.1} parent=5 // pred_fallthru
        _
      %p80 = scmp.lt.s32.totalorder %s13, 2
      // Predicated region
      $region13: #{tpu_custom_call.1} parent=5 // pred_check
        %p81 = pneg %p80
      $region14: #{tpu_custom_call.1} parent=5 // pred_check_branch
        %83 = sbr.rel (%p81) target = $region16
      $region15: #{tpu_custom_call.1} parent=5 // pred_region
        // Predicated region
        $region17: #{tpu_custom_call.1} parent=15 // pred_check
          %p84 = pneg %p33
        $region18: #{tpu_custom_call.1} parent=15 // pred_check_branch
          %86 = sbr.rel (%p84) target = $region20
        $region19: #{tpu_custom_call.1} parent=15 // pred_region
          %s87 = sand.u32 %s23, 1
          %s88 = scalar_lea.sflag [#allocation3], %s87
          %s89 = sand.u32 %s23, 1
          %s90 = smul.addr %s89, 2048
          %s91 = scalar_lea.vmem [#allocation2], %s90
          %s92 = smul.u32 4, %s13
          %s94 = ssub.s32 32768, 32768
          %95 = vsyncadd %s88, %s94
          %s96 = smul.addr %s92, 64
          %s97 = smul.addr %s96, 128
          %s98 = scalar_lea.hbm %s0, %s97
          %s99 = sshll.u32 %s91, 4
          %s100 = int_to_ptr.vmem [resolvable:$true] %s99
          %105 = dma.hbm_to_vmem [thread:$0]  %s98, 32768, %s100, %s88, 8192, 8192, 512
        $region20: #{tpu_custom_call.1} parent=15 // pred_fallthru
          _
      $region16: #{tpu_custom_call.1} parent=5 // pred_fallthru
        _
      %p106 = scmp.le.s32.totalorder 1, %s13
      %p107 = scmp.lt.s32.totalorder %s13, 3
      %p108 = pnand %p106, %p107
      %p109 = pneg %p108
      // Predicated region
      $region21: #{tpu_custom_call.1} parent=5 // pred_check
        _
      $region22: #{tpu_custom_call.1} parent=5 // pred_check_branch
        %111 = sbr.rel (%p108) target = $region24
      $region23: #{tpu_custom_call.1} parent=5 // pred_region
        %s112 = ssub.s32 %s13, 1
        %s113 = sand.u32 %s26, 1
        %s114 = scalar_lea.sflag [#allocation3], %s113
        %s115 = sand.u32 %s26, 1
        %s116 = smul.addr %s115, 2048
        %s117 = scalar_lea.vmem [#allocation2], %s116
        // Predicated region
        $region25: #{tpu_custom_call.1} parent=23 // pred_check
          %p118 = pneg %p39
        $region26: #{tpu_custom_call.1} parent=23 // pred_check_branch
          %120 = sbr.rel (%p118) target = $region28
        $region27: #{tpu_custom_call.1} parent=23 // pred_region
          %121 = dma.done %s114, 32768
        $region28: #{tpu_custom_call.1} parent=23 // pred_fallthru
          _
        %s122 = sand.u32 %s26, 1
        %s123 = scalar_lea.sflag [#allocation3], %s122
        %s124 = sand.u32 %s26, 1
        %s125 = smul.addr %s124, 2048
        %s126 = scalar_lea.vmem [#allocation2], %s125
        %p127 = pneg %p39
        %p128 = pneg %p36
        %p129 = pneg %p65
        %p130 = pneg %p62
        %s131 = sand.u32 %s52, 1
        %s132 = scalar_lea.sflag [#allocation4], %s131
        %s133 = sand.u32 %s52, 1
        %s134 = smul.addr %s133, 2048
        %s135 = scalar_lea.vmem [#allocation5], %s134
        %s136 = smul.u32 4, %s18
        %s137 = smul.u32 4, %s18
        %v138 = vld [vmem:[%s117] sm:$0xff]
        %v139 = vld [vmem:[%s117 + $0x8] sm:$0xff]
        %v140 = vld [vmem:[%s117 + $0x10] sm:$0xff]
        %v141 = vld [vmem:[%s117 + $0x18] sm:$0xff]
        %v142 = vld [vmem:[%s117 + $0x20] sm:$0xff]
        %v143 = vld [vmem:[%s117 + $0x28] sm:$0xff]
        %v144 = vld [vmem:[%s117 + $0x30] sm:$0xff]
        %v145 = vld [vmem:[%s117 + $0x38] sm:$0xff]
        %v146 = vld [vmem:[%s117 + $0x40] sm:$0xff]
        %v147 = vld [vmem:[%s117 + $0x48] sm:$0xff]
        %v148 = vld [vmem:[%s117 + $0x50] sm:$0xff]
        %v149 = vld [vmem:[%s117 + $0x58] sm:$0xff]
        %v150 = vld [vmem:[%s117 + $0x60] sm:$0xff]
        %v151 = vld [vmem:[%s117 + $0x68] sm:$0xff]
        %v152 = vld [vmem:[%s117 + $0x70] sm:$0xff]
        %v153 = vld [vmem:[%s117 + $0x78] sm:$0xff]
        %v154 = vld [vmem:[%s117 + $0x80] sm:$0xff]
        %v155 = vld [vmem:[%s117 + $0x88] sm:$0xff]
        %v156 = vld [vmem:[%s117 + $0x90] sm:$0xff]
        %v157 = vld [vmem:[%s117 + $0x98] sm:$0xff]
        %v158 = vld [vmem:[%s117 + $0xa0] sm:$0xff]
        %v159 = vld [vmem:[%s117 + $0xa8] sm:$0xff]
        %v160 = vld [vmem:[%s117 + $0xb0] sm:$0xff]
        %v161 = vld [vmem:[%s117 + $0xb8] sm:$0xff]
        %v162 = vld [vmem:[%s117 + $0xc0] sm:$0xff]
        %v163 = vld [vmem:[%s117 + $0xc8] sm:$0xff]
        %v164 = vld [vmem:[%s117 + $0xd0] sm:$0xff]
        %v165 = vld [vmem:[%s117 + $0xd8] sm:$0xff]
        %v166 = vld [vmem:[%s117 + $0xe0] sm:$0xff]
        %v167 = vld [vmem:[%s117 + $0xe8] sm:$0xff]
        %v168 = vld [vmem:[%s117 + $0xf0] sm:$0xff]
        %v169 = vld [vmem:[%s117 + $0xf8] sm:$0xff]
        %v170 = vld [vmem:[%s117 + $0x100] sm:$0xff]
        %v171 = vld [vmem:[%s117 + $0x108] sm:$0xff]
        %v172 = vld [vmem:[%s117 + $0x110] sm:$0xff]
        %v173 = vld [vmem:[%s117 + $0x118] sm:$0xff]
        %v174 = vld [vmem:[%s117 + $0x120] sm:$0xff]
        %v175 = vld [vmem:[%s117 + $0x128] sm:$0xff]
        %v176 = vld [vmem:[%s117 + $0x130] sm:$0xff]
        %v177 = vld [vmem:[%s117 + $0x138] sm:$0xff]
        %v178 = vld [vmem:[%s117 + $0x140] sm:$0xff]
        %v179 = vld [vmem:[%s117 + $0x148] sm:$0xff]
        %v180 = vld [vmem:[%s117 + $0x150] sm:$0xff]
        %v181 = vld [vmem:[%s117 + $0x158] sm:$0xff]
        %v182 = vld [vmem:[%s117 + $0x160] sm:$0xff]
        %v183 = vld [vmem:[%s117 + $0x168] sm:$0xff]
        %v184 = vld [vmem:[%s117 + $0x170] sm:$0xff]
        %v185 = vld [vmem:[%s117 + $0x178] sm:$0xff]
        %v186 = vld [vmem:[%s117 + $0x180] sm:$0xff]
        %v187 = vld [vmem:[%s117 + $0x188] sm:$0xff]
        %v188 = vld [vmem:[%s117 + $0x190] sm:$0xff]
        %v189 = vld [vmem:[%s117 + $0x198] sm:$0xff]
        %v190 = vld [vmem:[%s117 + $0x1a0] sm:$0xff]
        %v191 = vld [vmem:[%s117 + $0x1a8] sm:$0xff]
        %v192 = vld [vmem:[%s117 + $0x1b0] sm:$0xff]
        %v193 = vld [vmem:[%s117 + $0x1b8] sm:$0xff]
        %v194 = vld [vmem:[%s117 + $0x1c0] sm:$0xff]
        %v195 = vld [vmem:[%s117 + $0x1c8] sm:$0xff]
        %v196 = vld [vmem:[%s117 + $0x1d0] sm:$0xff]
        %v197 = vld [vmem:[%s117 + $0x1d8] sm:$0xff]
        %v198 = vld [vmem:[%s117 + $0x1e0] sm:$0xff]
        %v199 = vld [vmem:[%s117 + $0x1e8] sm:$0xff]
        %v200 = vld [vmem:[%s117 + $0x1f0] sm:$0xff]
        %v201 = vld [vmem:[%s117 + $0x1f8] sm:$0xff]
        %v202 = vld [vmem:[%s117 + $0x200] sm:$0xff]
        %v203 = vld [vmem:[%s117 + $0x208] sm:$0xff]
        %v204 = vld [vmem:[%s117 + $0x210] sm:$0xff]
        %v205 = vld [vmem:[%s117 + $0x218] sm:$0xff]
        %v206 = vld [vmem:[%s117 + $0x220] sm:$0xff]
        %v207 = vld [vmem:[%s117 + $0x228] sm:$0xff]
        %v208 = vld [vmem:[%s117 + $0x230] sm:$0xff]
        %v209 = vld [vmem:[%s117 + $0x238] sm:$0xff]
        %v210 = vld [vmem:[%s117 + $0x240] sm:$0xff]
        %v211 = vld [vmem:[%s117 + $0x248] sm:$0xff]
        %v212 = vld [vmem:[%s117 + $0x250] sm:$0xff]
        %v213 = vld [vmem:[%s117 + $0x258] sm:$0xff]
        %v214 = vld [vmem:[%s117 + $0x260] sm:$0xff]
        %v215 = vld [vmem:[%s117 + $0x268] sm:$0xff]
        %v216 = vld [vmem:[%s117 + $0x270] sm:$0xff]
        %v217 = vld [vmem:[%s117 + $0x278] sm:$0xff]
        %v218 = vld [vmem:[%s117 + $0x280] sm:$0xff]
        %v219 = vld [vmem:[%s117 + $0x288] sm:$0xff]
        %v220 = vld [vmem:[%s117 + $0x290] sm:$0xff]
        %v221 = vld [vmem:[%s117 + $0x298] sm:$0xff]
        %v222 = vld [vmem:[%s117 + $0x2a0] sm:$0xff]
        %v223 = vld [vmem:[%s117 + $0x2a8] sm:$0xff]
        %v224 = vld [vmem:[%s117 + $0x2b0] sm:$0xff]
        %v225 = vld [vmem:[%s117 + $0x2b8] sm:$0xff]
        %v226 = vld [vmem:[%s117 + $0x2c0] sm:$0xff]
        %v227 = vld [vmem:[%s117 + $0x2c8] sm:$0xff]
        %v228 = vld [vmem:[%s117 + $0x2d0] sm:$0xff]
        %v229 = vld [vmem:[%s117 + $0x2d8] sm:$0xff]
        %v230 = vld [vmem:[%s117 + $0x2e0] sm:$0xff]
        %v231 = vld [vmem:[%s117 + $0x2e8] sm:$0xff]
        %v232 = vld [vmem:[%s117 + $0x2f0] sm:$0xff]
        %v233 = vld [vmem:[%s117 + $0x2f8] sm:$0xff]
        %v234 = vld [vmem:[%s117 + $0x300] sm:$0xff]
        %v235 = vld [vmem:[%s117 + $0x308] sm:$0xff]
        %v236 = vld [vmem:[%s117 + $0x310] sm:$0xff]
        %v237 = vld [vmem:[%s117 + $0x318] sm:$0xff]
        %v238 = vld [vmem:[%s117 + $0x320] sm:$0xff]
        %v239 = vld [vmem:[%s117 + $0x328] sm:$0xff]
        %v240 = vld [vmem:[%s117 + $0x330] sm:$0xff]
        %v241 = vld [vmem:[%s117 + $0x338] sm:$0xff]
        %v242 = vld [vmem:[%s117 + $0x340] sm:$0xff]
        %v243 = vld [vmem:[%s117 + $0x348] sm:$0xff]
        %v244 = vld [vmem:[%s117 + $0x350] sm:$0xff]
        %v245 = vld [vmem:[%s117 + $0x358] sm:$0xff]
        %v246 = vld [vmem:[%s117 + $0x360] sm:$0xff]
        %v247 = vld [vmem:[%s117 + $0x368] sm:$0xff]
        %v248 = vld [vmem:[%s117 + $0x370] sm:$0xff]
        %v249 = vld [vmem:[%s117 + $0x378] sm:$0xff]
        %v250 = vld [vmem:[%s117 + $0x380] sm:$0xff]
        %v251 = vld [vmem:[%s117 + $0x388] sm:$0xff]
        %v252 = vld [vmem:[%s117 + $0x390] sm:$0xff]
        %v253 = vld [vmem:[%s117 + $0x398] sm:$0xff]
        %v254 = vld [vmem:[%s117 + $0x3a0] sm:$0xff]
        %v255 = vld [vmem:[%s117 + $0x3a8] sm:$0xff]
        %v256 = vld [vmem:[%s117 + $0x3b0] sm:$0xff]
        %v257 = vld [vmem:[%s117 + $0x3b8] sm:$0xff]
        %v258 = vld [vmem:[%s117 + $0x3c0] sm:$0xff]
        %v259 = vld [vmem:[%s117 + $0x3c8] sm:$0xff]
        %v260 = vld [vmem:[%s117 + $0x3d0] sm:$0xff]
        %v261 = vld [vmem:[%s117 + $0x3d8] sm:$0xff]
        %v262 = vld [vmem:[%s117 + $0x3e0] sm:$0xff]
        %v263 = vld [vmem:[%s117 + $0x3e8] sm:$0xff]
        %v264 = vld [vmem:[%s117 + $0x3f0] sm:$0xff]
        %v265 = vld [vmem:[%s117 + $0x3f8] sm:$0xff]
        %v266 = vld [vmem:[%s117 + $0x400] sm:$0xff]
        %v267 = vld [vmem:[%s117 + $0x408] sm:$0xff]
        %v268 = vld [vmem:[%s117 + $0x410] sm:$0xff]
        %v269 = vld [vmem:[%s117 + $0x418] sm:$0xff]
        %v270 = vld [vmem:[%s117 + $0x420] sm:$0xff]
        %v271 = vld [vmem:[%s117 + $0x428] sm:$0xff]
        %v272 = vld [vmem:[%s117 + $0x430] sm:$0xff]
        %v273 = vld [vmem:[%s117 + $0x438] sm:$0xff]
        %v274 = vld [vmem:[%s117 + $0x440] sm:$0xff]
        %v275 = vld [vmem:[%s117 + $0x448] sm:$0xff]
        %v276 = vld [vmem:[%s117 + $0x450] sm:$0xff]
        %v277 = vld [vmem:[%s117 + $0x458] sm:$0xff]
        %v278 = vld [vmem:[%s117 + $0x460] sm:$0xff]
        %v279 = vld [vmem:[%s117 + $0x468] sm:$0xff]
        %v280 = vld [vmem:[%s117 + $0x470] sm:$0xff]
        %v281 = vld [vmem:[%s117 + $0x478] sm:$0xff]
        %v282 = vld [vmem:[%s117 + $0x480] sm:$0xff]
        %v283 = vld [vmem:[%s117 + $0x488] sm:$0xff]
        %v284 = vld [vmem:[%s117 + $0x490] sm:$0xff]
        %v285 = vld [vmem:[%s117 + $0x498] sm:$0xff]
        %v286 = vld [vmem:[%s117 + $0x4a0] sm:$0xff]
        %v287 = vld [vmem:[%s117 + $0x4a8] sm:$0xff]
        %v288 = vld [vmem:[%s117 + $0x4b0] sm:$0xff]
        %v289 = vld [vmem:[%s117 + $0x4b8] sm:$0xff]
        %v290 = vld [vmem:[%s117 + $0x4c0] sm:$0xff]
        %v291 = vld [vmem:[%s117 + $0x4c8] sm:$0xff]
        %v292 = vld [vmem:[%s117 + $0x4d0] sm:$0xff]
        %v293 = vld [vmem:[%s117 + $0x4d8] sm:$0xff]
        %v294 = vld [vmem:[%s117 + $0x4e0] sm:$0xff]
        %v295 = vld [vmem:[%s117 + $0x4e8] sm:$0xff]
        %v296 = vld [vmem:[%s117 + $0x4f0] sm:$0xff]
        %v297 = vld [vmem:[%s117 + $0x4f8] sm:$0xff]
        %v298 = vld [vmem:[%s117 + $0x500] sm:$0xff]
        %v299 = vld [vmem:[%s117 + $0x508] sm:$0xff]
        %v300 = vld [vmem:[%s117 + $0x510] sm:$0xff]
        %v301 = vld [vmem:[%s117 + $0x518] sm:$0xff]
        %v302 = vld [vmem:[%s117 + $0x520] sm:$0xff]
        %v303 = vld [vmem:[%s117 + $0x528] sm:$0xff]
        %v304 = vld [vmem:[%s117 + $0x530] sm:$0xff]
        %v305 = vld [vmem:[%s117 + $0x538] sm:$0xff]
        %v306 = vld [vmem:[%s117 + $0x540] sm:$0xff]
        %v307 = vld [vmem:[%s117 + $0x548] sm:$0xff]
        %v308 = vld [vmem:[%s117 + $0x550] sm:$0xff]
        %v309 = vld [vmem:[%s117 + $0x558] sm:$0xff]
        %v310 = vld [vmem:[%s117 + $0x560] sm:$0xff]
        %v311 = vld [vmem:[%s117 + $0x568] sm:$0xff]
        %v312 = vld [vmem:[%s117 + $0x570] sm:$0xff]
        %v313 = vld [vmem:[%s117 + $0x578] sm:$0xff]
        %v314 = vld [vmem:[%s117 + $0x580] sm:$0xff]
        %v315 = vld [vmem:[%s117 + $0x588] sm:$0xff]
        %v316 = vld [vmem:[%s117 + $0x590] sm:$0xff]
        %v317 = vld [vmem:[%s117 + $0x598] sm:$0xff]
        %v318 = vld [vmem:[%s117 + $0x5a0] sm:$0xff]
        %v319 = vld [vmem:[%s117 + $0x5a8] sm:$0xff]
        %v320 = vld [vmem:[%s117 + $0x5b0] sm:$0xff]
        %v321 = vld [vmem:[%s117 + $0x5b8] sm:$0xff]
        %v322 = vld [vmem:[%s117 + $0x5c0] sm:$0xff]
        %v323 = vld [vmem:[%s117 + $0x5c8] sm:$0xff]
        %v324 = vld [vmem:[%s117 + $0x5d0] sm:$0xff]
        %v325 = vld [vmem:[%s117 + $0x5d8] sm:$0xff]
        %v326 = vld [vmem:[%s117 + $0x5e0] sm:$0xff]
        %v327 = vld [vmem:[%s117 + $0x5e8] sm:$0xff]
        %v328 = vld [vmem:[%s117 + $0x5f0] sm:$0xff]
        %v329 = vld [vmem:[%s117 + $0x5f8] sm:$0xff]
        %v330 = vld [vmem:[%s117 + $0x600] sm:$0xff]
        %v331 = vld [vmem:[%s117 + $0x608] sm:$0xff]
        %v332 = vld [vmem:[%s117 + $0x610] sm:$0xff]
        %v333 = vld [vmem:[%s117 + $0x618] sm:$0xff]
        %v334 = vld [vmem:[%s117 + $0x620] sm:$0xff]
        %v335 = vld [vmem:[%s117 + $0x628] sm:$0xff]
        %v336 = vld [vmem:[%s117 + $0x630] sm:$0xff]
        %v337 = vld [vmem:[%s117 + $0x638] sm:$0xff]
        %v338 = vld [vmem:[%s117 + $0x640] sm:$0xff]
        %v339 = vld [vmem:[%s117 + $0x648] sm:$0xff]
        %v340 = vld [vmem:[%s117 + $0x650] sm:$0xff]
        %v341 = vld [vmem:[%s117 + $0x658] sm:$0xff]
        %v342 = vld [vmem:[%s117 + $0x660] sm:$0xff]
        %v343 = vld [vmem:[%s117 + $0x668] sm:$0xff]
        %v344 = vld [vmem:[%s117 + $0x670] sm:$0xff]
        %v345 = vld [vmem:[%s117 + $0x678] sm:$0xff]
        %v346 = vld [vmem:[%s117 + $0x680] sm:$0xff]
        %v347 = vld [vmem:[%s117 + $0x688] sm:$0xff]
        %v348 = vld [vmem:[%s117 + $0x690] sm:$0xff]
        %v349 = vld [vmem:[%s117 + $0x698] sm:$0xff]
        %v350 = vld [vmem:[%s117 + $0x6a0] sm:$0xff]
        %v351 = vld [vmem:[%s117 + $0x6a8] sm:$0xff]
        %v352 = vld [vmem:[%s117 + $0x6b0] sm:$0xff]
        %v353 = vld [vmem:[%s117 + $0x6b8] sm:$0xff]
        %v354 = vld [vmem:[%s117 + $0x6c0] sm:$0xff]
        %v355 = vld [vmem:[%s117 + $0x6c8] sm:$0xff]
        %v356 = vld [vmem:[%s117 + $0x6d0] sm:$0xff]
        %v357 = vld [vmem:[%s117 + $0x6d8] sm:$0xff]
        %v358 = vld [vmem:[%s117 + $0x6e0] sm:$0xff]
        %v359 = vld [vmem:[%s117 + $0x6e8] sm:$0xff]
        %v360 = vld [vmem:[%s117 + $0x6f0] sm:$0xff]
        %v361 = vld [vmem:[%s117 + $0x6f8] sm:$0xff]
        %v362 = vld [vmem:[%s117 + $0x700] sm:$0xff]
        %v363 = vld [vmem:[%s117 + $0x708] sm:$0xff]
        %v364 = vld [vmem:[%s117 + $0x710] sm:$0xff]
        %v365 = vld [vmem:[%s117 + $0x718] sm:$0xff]
        %v366 = vld [vmem:[%s117 + $0x720] sm:$0xff]
        %v367 = vld [vmem:[%s117 + $0x728] sm:$0xff]
        %v368 = vld [vmem:[%s117 + $0x730] sm:$0xff]
        %v369 = vld [vmem:[%s117 + $0x738] sm:$0xff]
        %v370 = vld [vmem:[%s117 + $0x740] sm:$0xff]
        %v371 = vld [vmem:[%s117 + $0x748] sm:$0xff]
        %v372 = vld [vmem:[%s117 + $0x750] sm:$0xff]
        %v373 = vld [vmem:[%s117 + $0x758] sm:$0xff]
        %v374 = vld [vmem:[%s117 + $0x760] sm:$0xff]
        %v375 = vld [vmem:[%s117 + $0x768] sm:$0xff]
        %v376 = vld [vmem:[%s117 + $0x770] sm:$0xff]
        %v377 = vld [vmem:[%s117 + $0x778] sm:$0xff]
        %v378 = vld [vmem:[%s117 + $0x780] sm:$0xff]
        %v379 = vld [vmem:[%s117 + $0x788] sm:$0xff]
        %v380 = vld [vmem:[%s117 + $0x790] sm:$0xff]
        %v381 = vld [vmem:[%s117 + $0x798] sm:$0xff]
        %v382 = vld [vmem:[%s117 + $0x7a0] sm:$0xff]
        %v383 = vld [vmem:[%s117 + $0x7a8] sm:$0xff]
        %v384 = vld [vmem:[%s117 + $0x7b0] sm:$0xff]
        %v385 = vld [vmem:[%s117 + $0x7b8] sm:$0xff]
        %v386 = vld [vmem:[%s117 + $0x7c0] sm:$0xff]
        %v387 = vld [vmem:[%s117 + $0x7c8] sm:$0xff]
        %v388 = vld [vmem:[%s117 + $0x7d0] sm:$0xff]
        %v389 = vld [vmem:[%s117 + $0x7d8] sm:$0xff]
        %v390 = vld [vmem:[%s117 + $0x7e0] sm:$0xff]
        %v391 = vld [vmem:[%s117 + $0x7e8] sm:$0xff]
        %v392 = vld [vmem:[%s117 + $0x7f0] sm:$0xff]
        %v393 = vld [vmem:[%s117 + $0x7f8] sm:$0xff]
        %v394 = vmul.f32 %v138, 0.5
        %v395 = vmul.f32 %v139, 0.5
        %v396 = vmul.f32 %v140, 0.5
        %v397 = vmul.f32 %v141, 0.5
        %v398 = vmul.f32 %v142, 0.5
        %v399 = vmul.f32 %v143, 0.5
        %v400 = vmul.f32 %v144, 0.5
        %v401 = vmul.f32 %v145, 0.5
        %v402 = vmul.f32 %v146, 0.5
        %v403 = vmul.f32 %v147, 0.5
        %v404 = vmul.f32 %v148, 0.5
        %v405 = vmul.f32 %v149, 0.5
        %v406 = vmul.f32 %v150, 0.5
        %v407 = vmul.f32 %v151, 0.5
        %v408 = vmul.f32 %v152, 0.5
        %v409 = vmul.f32 %v153, 0.5
        %v410 = vmul.f32 %v154, 0.5
        %v411 = vmul.f32 %v155, 0.5
        %v412 = vmul.f32 %v156, 0.5
        %v413 = vmul.f32 %v157, 0.5
        %v414 = vmul.f32 %v158, 0.5
        %v415 = vmul.f32 %v159, 0.5
        %v416 = vmul.f32 %v160, 0.5
        %v417 = vmul.f32 %v161, 0.5
        %v418 = vmul.f32 %v162, 0.5
        %v419 = vmul.f32 %v163, 0.5
        %v420 = vmul.f32 %v164, 0.5
        %v421 = vmul.f32 %v165, 0.5
        %v422 = vmul.f32 %v166, 0.5
        %v423 = vmul.f32 %v167, 0.5
        %v424 = vmul.f32 %v168, 0.5
        %v425 = vmul.f32 %v169, 0.5
        %v426 = vmul.f32 %v170, 0.5
        %v427 = vmul.f32 %v171, 0.5
        %v428 = vmul.f32 %v172, 0.5
        %v429 = vmul.f32 %v173, 0.5
        %v430 = vmul.f32 %v174, 0.5
        %v431 = vmul.f32 %v175, 0.5
        %v432 = vmul.f32 %v176, 0.5
        %v433 = vmul.f32 %v177, 0.5
        %v434 = vmul.f32 %v178, 0.5
        %v435 = vmul.f32 %v179, 0.5
        %v436 = vmul.f32 %v180, 0.5
        %v437 = vmul.f32 %v181, 0.5
        %v438 = vmul.f32 %v182, 0.5
        %v439 = vmul.f32 %v183, 0.5
        %v440 = vmul.f32 %v184, 0.5
        %v441 = vmul.f32 %v185, 0.5
        %v442 = vmul.f32 %v186, 0.5
        %v443 = vmul.f32 %v187, 0.5
        %v444 = vmul.f32 %v188, 0.5
        %v445 = vmul.f32 %v189, 0.5
        %v446 = vmul.f32 %v190, 0.5
        %v447 = vmul.f32 %v191, 0.5
        %v448 = vmul.f32 %v192, 0.5
        %v449 = vmul.f32 %v193, 0.5
        %v450 = vmul.f32 %v194, 0.5
        %v451 = vmul.f32 %v195, 0.5
        %v452 = vmul.f32 %v196, 0.5
        %v453 = vmul.f32 %v197, 0.5
        %v454 = vmul.f32 %v198, 0.5
        %v455 = vmul.f32 %v199, 0.5
        %v456 = vmul.f32 %v200, 0.5
        %v457 = vmul.f32 %v201, 0.5
        %v458 = vmul.f32 %v202, 0.5
        %v459 = vmul.f32 %v203, 0.5
        %v460 = vmul.f32 %v204, 0.5
        %v461 = vmul.f32 %v205, 0.5
        %v462 = vmul.f32 %v206, 0.5
        %v463 = vmul.f32 %v207, 0.5
        %v464 = vmul.f32 %v208, 0.5
        %v465 = vmul.f32 %v209, 0.5
        %v466 = vmul.f32 %v210, 0.5
        %v467 = vmul.f32 %v211, 0.5
        %v468 = vmul.f32 %v212, 0.5
        %v469 = vmul.f32 %v213, 0.5
        %v470 = vmul.f32 %v214, 0.5
        %v471 = vmul.f32 %v215, 0.5
        %v472 = vmul.f32 %v216, 0.5
        %v473 = vmul.f32 %v217, 0.5
        %v474 = vmul.f32 %v218, 0.5
        %v475 = vmul.f32 %v219, 0.5
        %v476 = vmul.f32 %v220, 0.5
        %v477 = vmul.f32 %v221, 0.5
        %v478 = vmul.f32 %v222, 0.5
        %v479 = vmul.f32 %v223, 0.5
        %v480 = vmul.f32 %v224, 0.5
        %v481 = vmul.f32 %v225, 0.5
        %v482 = vmul.f32 %v226, 0.5
        %v483 = vmul.f32 %v227, 0.5
        %v484 = vmul.f32 %v228, 0.5
        %v485 = vmul.f32 %v229, 0.5
        %v486 = vmul.f32 %v230, 0.5
        %v487 = vmul.f32 %v231, 0.5
        %v488 = vmul.f32 %v232, 0.5
        %v489 = vmul.f32 %v233, 0.5
        %v490 = vmul.f32 %v234, 0.5
        %v491 = vmul.f32 %v235, 0.5
        %v492 = vmul.f32 %v236, 0.5
        %v493 = vmul.f32 %v237, 0.5
        %v494 = vmul.f32 %v238, 0.5
        %v495 = vmul.f32 %v239, 0.5
        %v496 = vmul.f32 %v240, 0.5
        %v497 = vmul.f32 %v241, 0.5
        %v498 = vmul.f32 %v242, 0.5
        %v499 = vmul.f32 %v243, 0.5
        %v500 = vmul.f32 %v244, 0.5
        %v501 = vmul.f32 %v245, 0.5
        %v502 = vmul.f32 %v246, 0.5
        %v503 = vmul.f32 %v247, 0.5
        %v504 = vmul.f32 %v248, 0.5
        %v505 = vmul.f32 %v249, 0.5
        %v506 = vmul.f32 %v250, 0.5
        %v507 = vmul.f32 %v251, 0.5
        %v508 = vmul.f32 %v252, 0.5
        %v509 = vmul.f32 %v253, 0.5
        %v510 = vmul.f32 %v254, 0.5
        %v511 = vmul.f32 %v255, 0.5
        %v512 = vmul.f32 %v256, 0.5
        %v513 = vmul.f32 %v257, 0.5
        %v514 = vmul.f32 %v258, 0.5
        %v515 = vmul.f32 %v259, 0.5
        %v516 = vmul.f32 %v260, 0.5
        %v517 = vmul.f32 %v261, 0.5
        %v518 = vmul.f32 %v262, 0.5
        %v519 = vmul.f32 %v263, 0.5
        %v520 = vmul.f32 %v264, 0.5
        %v521 = vmul.f32 %v265, 0.5
        %v522 = vmul.f32 %v266, 0.5
        %v523 = vmul.f32 %v267, 0.5
        %v524 = vmul.f32 %v268, 0.5
        %v525 = vmul.f32 %v269, 0.5
        %v526 = vmul.f32 %v270, 0.5
        %v527 = vmul.f32 %v271, 0.5
        %v528 = vmul.f32 %v272, 0.5
        %v529 = vmul.f32 %v273, 0.5
        %v530 = vmul.f32 %v274, 0.5
        %v531 = vmul.f32 %v275, 0.5
        %v532 = vmul.f32 %v276, 0.5
        %v533 = vmul.f32 %v277, 0.5
        %v534 = vmul.f32 %v278, 0.5
        %v535 = vmul.f32 %v279, 0.5
        %v536 = vmul.f32 %v280, 0.5
        %v537 = vmul.f32 %v281, 0.5
        %v538 = vmul.f32 %v282, 0.5
        %v539 = vmul.f32 %v283, 0.5
        %v540 = vmul.f32 %v284, 0.5
        %v541 = vmul.f32 %v285, 0.5
        %v542 = vmul.f32 %v286, 0.5
        %v543 = vmul.f32 %v287, 0.5
        %v544 = vmul.f32 %v288, 0.5
        %v545 = vmul.f32 %v289, 0.5
        %v546 = vmul.f32 %v290, 0.5
        %v547 = vmul.f32 %v291, 0.5
        %v548 = vmul.f32 %v292, 0.5
        %v549 = vmul.f32 %v293, 0.5
        %v550 = vmul.f32 %v294, 0.5
        %v551 = vmul.f32 %v295, 0.5
        %v552 = vmul.f32 %v296, 0.5
        %v553 = vmul.f32 %v297, 0.5
        %v554 = vmul.f32 %v298, 0.5
        %v555 = vmul.f32 %v299, 0.5
        %v556 = vmul.f32 %v300, 0.5
        %v557 = vmul.f32 %v301, 0.5
        %v558 = vmul.f32 %v302, 0.5
        %v559 = vmul.f32 %v303, 0.5
        %v560 = vmul.f32 %v304, 0.5
        %v561 = vmul.f32 %v305, 0.5
        %v562 = vmul.f32 %v306, 0.5
        %v563 = vmul.f32 %v307, 0.5
        %v564 = vmul.f32 %v308, 0.5
        %v565 = vmul.f32 %v309, 0.5
        %v566 = vmul.f32 %v310, 0.5
        %v567 = vmul.f32 %v311, 0.5
        %v568 = vmul.f32 %v312, 0.5
        %v569 = vmul.f32 %v313, 0.5
        %v570 = vmul.f32 %v314, 0.5
        %v571 = vmul.f32 %v315, 0.5
        %v572 = vmul.f32 %v316, 0.5
        %v573 = vmul.f32 %v317, 0.5
        %v574 = vmul.f32 %v318, 0.5
        %v575 = vmul.f32 %v319, 0.5
        %v576 = vmul.f32 %v320, 0.5
        %v577 = vmul.f32 %v321, 0.5
        %v578 = vmul.f32 %v322, 0.5
        %v579 = vmul.f32 %v323, 0.5
        %v580 = vmul.f32 %v324, 0.5
        %v581 = vmul.f32 %v325, 0.5
        %v582 = vmul.f32 %v326, 0.5
        %v583 = vmul.f32 %v327, 0.5
        %v584 = vmul.f32 %v328, 0.5
        %v585 = vmul.f32 %v329, 0.5
        %v586 = vmul.f32 %v330, 0.5
        %v587 = vmul.f32 %v331, 0.5
        %v588 = vmul.f32 %v332, 0.5
        %v589 = vmul.f32 %v333, 0.5
        %v590 = vmul.f32 %v334, 0.5
        %v591 = vmul.f32 %v335, 0.5
        %v592 = vmul.f32 %v336, 0.5
        %v593 = vmul.f32 %v337, 0.5
        %v594 = vmul.f32 %v338, 0.5
        %v595 = vmul.f32 %v339, 0.5
        %v596 = vmul.f32 %v340, 0.5
        %v597 = vmul.f32 %v341, 0.5
        %v598 = vmul.f32 %v342, 0.5
        %v599 = vmul.f32 %v343, 0.5
        %v600 = vmul.f32 %v344, 0.5
        %v601 = vmul.f32 %v345, 0.5
        %v602 = vmul.f32 %v346, 0.5
        %v603 = vmul.f32 %v347, 0.5
        %v604 = vmul.f32 %v348, 0.5
        %v605 = vmul.f32 %v349, 0.5
        %v606 = vmul.f32 %v350, 0.5
        %v607 = vmul.f32 %v351, 0.5
        %v608 = vmul.f32 %v352, 0.5
        %v609 = vmul.f32 %v353, 0.5
        %v610 = vmul.f32 %v354, 0.5
        %v611 = vmul.f32 %v355, 0.5
        %v612 = vmul.f32 %v356, 0.5
        %v613 = vmul.f32 %v357, 0.5
        %v614 = vmul.f32 %v358, 0.5
        %v615 = vmul.f32 %v359, 0.5
        %v616 = vmul.f32 %v360, 0.5
        %v617 = vmul.f32 %v361, 0.5
        %v618 = vmul.f32 %v362, 0.5
        %v619 = vmul.f32 %v363, 0.5
        %v620 = vmul.f32 %v364, 0.5
        %v621 = vmul.f32 %v365, 0.5
        %v622 = vmul.f32 %v366, 0.5
        %v623 = vmul.f32 %v367, 0.5
        %v624 = vmul.f32 %v368, 0.5
        %v625 = vmul.f32 %v369, 0.5
        %v626 = vmul.f32 %v370, 0.5
        %v627 = vmul.f32 %v371, 0.5
        %v628 = vmul.f32 %v372, 0.5
        %v629 = vmul.f32 %v373, 0.5
        %v630 = vmul.f32 %v374, 0.5
        %v631 = vmul.f32 %v375, 0.5
        %v632 = vmul.f32 %v376, 0.5
        %v633 = vmul.f32 %v377, 0.5
        %v634 = vmul.f32 %v378, 0.5
        %v635 = vmul.f32 %v379, 0.5
        %v636 = vmul.f32 %v380, 0.5
        %v637 = vmul.f32 %v381, 0.5
        %v638 = vmul.f32 %v382, 0.5
        %v639 = vmul.f32 %v383, 0.5
        %v640 = vmul.f32 %v384, 0.5
        %v641 = vmul.f32 %v385, 0.5
        %v642 = vmul.f32 %v386, 0.5
        %v643 = vmul.f32 %v387, 0.5
        %v644 = vmul.f32 %v388, 0.5
        %v645 = vmul.f32 %v389, 0.5
        %v646 = vmul.f32 %v390, 0.5
        %v647 = vmul.f32 %v391, 0.5
        %v648 = vmul.f32 %v392, 0.5
        %v649 = vmul.f32 %v393, 0.5
        %v650 = vtanh.pop %v394
        %v651 = vtanh.pop %v395
        %v652 = vtanh.pop %v396
        %v653 = vtanh.pop %v397
        %v654 = vtanh.pop %v398
        %v655 = vtanh.pop %v399
        %v656 = vtanh.pop %v400
        %v657 = vtanh.pop %v401
        %v658 = vtanh.pop %v402
        %v659 = vtanh.pop %v403
        %v660 = vtanh.pop %v404
        %v661 = vtanh.pop %v405
        %v662 = vtanh.pop %v406
        %v663 = vtanh.pop %v407
        %v664 = vtanh.pop %v408
        %v665 = vtanh.pop %v409
        %v666 = vtanh.pop %v410
        %v667 = vtanh.pop %v411
        %v668 = vtanh.pop %v412
        %v669 = vtanh.pop %v413
        %v670 = vtanh.pop %v414
        %v671 = vtanh.pop %v415
        %v672 = vtanh.pop %v416
        %v673 = vtanh.pop %v417
        %v674 = vtanh.pop %v418
        %v675 = vtanh.pop %v419
        %v676 = vtanh.pop %v420
        %v677 = vtanh.pop %v421
        %v678 = vtanh.pop %v422
        %v679 = vtanh.pop %v423
        %v680 = vtanh.pop %v424
        %v681 = vtanh.pop %v425
        %v682 = vtanh.pop %v426
        %v683 = vtanh.pop %v427
        %v684 = vtanh.pop %v428
        %v685 = vtanh.pop %v429
        %v686 = vtanh.pop %v430
        %v687 = vtanh.pop %v431
        %v688 = vtanh.pop %v432
        %v689 = vtanh.pop %v433
        %v690 = vtanh.pop %v434
        %v691 = vtanh.pop %v435
        %v692 = vtanh.pop %v436
        %v693 = vtanh.pop %v437
        %v694 = vtanh.pop %v438
        %v695 = vtanh.pop %v439
        %v696 = vtanh.pop %v440
        %v697 = vtanh.pop %v441
        %v698 = vtanh.pop %v442
        %v699 = vtanh.pop %v443
        %v700 = vtanh.pop %v444
        %v701 = vtanh.pop %v445
        %v702 = vtanh.pop %v446
        %v703 = vtanh.pop %v447
        %v704 = vtanh.pop %v448
        %v705 = vtanh.pop %v449
        %v706 = vtanh.pop %v450
        %v707 = vtanh.pop %v451
        %v708 = vtanh.pop %v452
        %v709 = vtanh.pop %v453
        %v710 = vtanh.pop %v454
        %v711 = vtanh.pop %v455
        %v712 = vtanh.pop %v456
        %v713 = vtanh.pop %v457
        %v714 = vtanh.pop %v458
        %v715 = vtanh.pop %v459
        %v716 = vtanh.pop %v460
        %v717 = vtanh.pop %v461
        %v718 = vtanh.pop %v462
        %v719 = vtanh.pop %v463
        %v720 = vtanh.pop %v464
        %v721 = vtanh.pop %v465
        %v722 = vtanh.pop %v466
        %v723 = vtanh.pop %v467
        %v724 = vtanh.pop %v468
        %v725 = vtanh.pop %v469
        %v726 = vtanh.pop %v470
        %v727 = vtanh.pop %v471
        %v728 = vtanh.pop %v472
        %v729 = vtanh.pop %v473
        %v730 = vtanh.pop %v474
        %v731 = vtanh.pop %v475
        %v732 = vtanh.pop %v476
        %v733 = vtanh.pop %v477
        %v734 = vtanh.pop %v478
        %v735 = vtanh.pop %v479
        %v736 = vtanh.pop %v480
        %v737 = vtanh.pop %v481
        %v738 = vtanh.pop %v482
        %v739 = vtanh.pop %v483
        %v740 = vtanh.pop %v484
        %v741 = vtanh.pop %v485
        %v742 = vtanh.pop %v486
        %v743 = vtanh.pop %v487
        %v744 = vtanh.pop %v488
        %v745 = vtanh.pop %v489
        %v746 = vtanh.pop %v490
        %v747 = vtanh.pop %v491
        %v748 = vtanh.pop %v492
        %v749 = vtanh.pop %v493
        %v750 = vtanh.pop %v494
        %v751 = vtanh.pop %v495
        %v752 = vtanh.pop %v496
        %v753 = vtanh.pop %v497
        %v754 = vtanh.pop %v498
        %v755 = vtanh.pop %v499
        %v756 = vtanh.pop %v500
        %v757 = vtanh.pop %v501
        %v758 = vtanh.pop %v502
        %v759 = vtanh.pop %v503
        %v760 = vtanh.pop %v504
        %v761 = vtanh.pop %v505
        %v762 = vtanh.pop %v506
        %v763 = vtanh.pop %v507
        %v764 = vtanh.pop %v508
        %v765 = vtanh.pop %v509
        %v766 = vtanh.pop %v510
        %v767 = vtanh.pop %v511
        %v768 = vtanh.pop %v512
        %v769 = vtanh.pop %v513
        %v770 = vtanh.pop %v514
        %v771 = vtanh.pop %v515
        %v772 = vtanh.pop %v516
        %v773 = vtanh.pop %v517
        %v774 = vtanh.pop %v518
        %v775 = vtanh.pop %v519
        %v776 = vtanh.pop %v520
        %v777 = vtanh.pop %v521
        %v778 = vtanh.pop %v522
        %v779 = vtanh.pop %v523
        %v780 = vtanh.pop %v524
        %v781 = vtanh.pop %v525
        %v782 = vtanh.pop %v526
        %v783 = vtanh.pop %v527
        %v784 = vtanh.pop %v528
        %v785 = vtanh.pop %v529
        %v786 = vtanh.pop %v530
        %v787 = vtanh.pop %v531
        %v788 = vtanh.pop %v532
        %v789 = vtanh.pop %v533
        %v790 = vtanh.pop %v534
        %v791 = vtanh.pop %v535
        %v792 = vtanh.pop %v536
        %v793 = vtanh.pop %v537
        %v794 = vtanh.pop %v538
        %v795 = vtanh.pop %v539
        %v796 = vtanh.pop %v540
        %v797 = vtanh.pop %v541
        %v798 = vtanh.pop %v542
        %v799 = vtanh.pop %v543
        %v800 = vtanh.pop %v544
        %v801 = vtanh.pop %v545
        %v802 = vtanh.pop %v546
        %v803 = vtanh.pop %v547
        %v804 = vtanh.pop %v548
        %v805 = vtanh.pop %v549
        %v806 = vtanh.pop %v550
        %v807 = vtanh.pop %v551
        %v808 = vtanh.pop %v552
        %v809 = vtanh.pop %v553
        %v810 = vtanh.pop %v554
        %v811 = vtanh.pop %v555
        %v812 = vtanh.pop %v556
        %v813 = vtanh.pop %v557
        %v814 = vtanh.pop %v558
        %v815 = vtanh.pop %v559
        %v816 = vtanh.pop %v560
        %v817 = vtanh.pop %v561
        %v818 = vtanh.pop %v562
        %v819 = vtanh.pop %v563
        %v820 = vtanh.pop %v564
        %v821 = vtanh.pop %v565
        %v822 = vtanh.pop %v566
        %v823 = vtanh.pop %v567
        %v824 = vtanh.pop %v568
        %v825 = vtanh.pop %v569
        %v826 = vtanh.pop %v570
        %v827 = vtanh.pop %v571
        %v828 = vtanh.pop %v572
        %v829 = vtanh.pop %v573
        %v830 = vtanh.pop %v574
        %v831 = vtanh.pop %v575
        %v832 = vtanh.pop %v576
        %v833 = vtanh.pop %v577
        %v834 = vtanh.pop %v578
        %v835 = vtanh.pop %v579
        %v836 = vtanh.pop %v580
        %v837 = vtanh.pop %v581
        %v838 = vtanh.pop %v582
        %v839 = vtanh.pop %v583
        %v840 = vtanh.pop %v584
        %v841 = vtanh.pop %v585
        %v842 = vtanh.pop %v586
        %v843 = vtanh.pop %v587
        %v844 = vtanh.pop %v588
        %v845 = vtanh.pop %v589
        %v846 = vtanh.pop %v590
        %v847 = vtanh.pop %v591
        %v848 = vtanh.pop %v592
        %v849 = vtanh.pop %v593
        %v850 = vtanh.pop %v594
        %v851 = vtanh.pop %v595
        %v852 = vtanh.pop %v596
        %v853 = vtanh.pop %v597
        %v854 = vtanh.pop %v598
        %v855 = vtanh.pop %v599
        %v856 = vtanh.pop %v600
        %v857 = vtanh.pop %v601
        %v858 = vtanh.pop %v602
        %v859 = vtanh.pop %v603
        %v860 = vtanh.pop %v604
        %v861 = vtanh.pop %v605
        %v862 = vtanh.pop %v606
        %v863 = vtanh.pop %v607
        %v864 = vtanh.pop %v608
        %v865 = vtanh.pop %v609
        %v866 = vtanh.pop %v610
        %v867 = vtanh.pop %v611
        %v868 = vtanh.pop %v612
        %v869 = vtanh.pop %v613
        %v870 = vtanh.pop %v614
        %v871 = vtanh.pop %v615
        %v872 = vtanh.pop %v616
        %v873 = vtanh.pop %v617
        %v874 = vtanh.pop %v618
        %v875 = vtanh.pop %v619
        %v876 = vtanh.pop %v620
        %v877 = vtanh.pop %v621
        %v878 = vtanh.pop %v622
        %v879 = vtanh.pop %v623
        %v880 = vtanh.pop %v624
        %v881 = vtanh.pop %v625
        %v882 = vtanh.pop %v626
        %v883 = vtanh.pop %v627
        %v884 = vtanh.pop %v628
        %v885 = vtanh.pop %v629
        %v886 = vtanh.pop %v630
        %v887 = vtanh.pop %v631
        %v888 = vtanh.pop %v632
        %v889 = vtanh.pop %v633
        %v890 = vtanh.pop %v634
        %v891 = vtanh.pop %v635
        %v892 = vtanh.pop %v636
        %v893 = vtanh.pop %v637
        %v894 = vtanh.pop %v638
        %v895 = vtanh.pop %v639
        %v896 = vtanh.pop %v640
        %v897 = vtanh.pop %v641
        %v898 = vtanh.pop %v642
        %v899 = vtanh.pop %v643
        %v900 = vtanh.pop %v644
        %v901 = vtanh.pop %v645
        %v902 = vtanh.pop %v646
        %v903 = vtanh.pop %v647
        %v904 = vtanh.pop %v648
        %v905 = vtanh.pop %v649
        %v906 = vadd.f32 %v650, 1.0
        %v907 = vadd.f32 %v651, 1.0
        %v908 = vadd.f32 %v652, 1.0
        %v909 = vadd.f32 %v653, 1.0
        %v910 = vadd.f32 %v654, 1.0
        %v911 = vadd.f32 %v655, 1.0
        %v912 = vadd.f32 %v656, 1.0
        %v913 = vadd.f32 %v657, 1.0
        %v914 = vadd.f32 %v658, 1.0
        %v915 = vadd.f32 %v659, 1.0
        %v916 = vadd.f32 %v660, 1.0
        %v917 = vadd.f32 %v661, 1.0
        %v918 = vadd.f32 %v662, 1.0
        %v919 = vadd.f32 %v663, 1.0
        %v920 = vadd.f32 %v664, 1.0
        %v921 = vadd.f32 %v665, 1.0
        %v922 = vadd.f32 %v666, 1.0
        %v923 = vadd.f32 %v667, 1.0
        %v924 = vadd.f32 %v668, 1.0
        %v925 = vadd.f32 %v669, 1.0
        %v926 = vadd.f32 %v670, 1.0
        %v927 = vadd.f32 %v671, 1.0
        %v928 = vadd.f32 %v672, 1.0
        %v929 = vadd.f32 %v673, 1.0
        %v930 = vadd.f32 %v674, 1.0
        %v931 = vadd.f32 %v675, 1.0
        %v932 = vadd.f32 %v676, 1.0
        %v933 = vadd.f32 %v677, 1.0
        %v934 = vadd.f32 %v678, 1.0
        %v935 = vadd.f32 %v679, 1.0
        %v936 = vadd.f32 %v680, 1.0
        %v937 = vadd.f32 %v681, 1.0
        %v938 = vadd.f32 %v682, 1.0
        %v939 = vadd.f32 %v683, 1.0
        %v940 = vadd.f32 %v684, 1.0
        %v941 = vadd.f32 %v685, 1.0
        %v942 = vadd.f32 %v686, 1.0
        %v943 = vadd.f32 %v687, 1.0
        %v944 = vadd.f32 %v688, 1.0
        %v945 = vadd.f32 %v689, 1.0
        %v946 = vadd.f32 %v690, 1.0
        %v947 = vadd.f32 %v691, 1.0
        %v948 = vadd.f32 %v692, 1.0
        %v949 = vadd.f32 %v693, 1.0
        %v950 = vadd.f32 %v694, 1.0
        %v951 = vadd.f32 %v695, 1.0
        %v952 = vadd.f32 %v696, 1.0
        %v953 = vadd.f32 %v697, 1.0
        %v954 = vadd.f32 %v698, 1.0
        %v955 = vadd.f32 %v699, 1.0
        %v956 = vadd.f32 %v700, 1.0
        %v957 = vadd.f32 %v701, 1.0
        %v958 = vadd.f32 %v702, 1.0
        %v959 = vadd.f32 %v703, 1.0
        %v960 = vadd.f32 %v704, 1.0
        %v961 = vadd.f32 %v705, 1.0
        %v962 = vadd.f32 %v706, 1.0
        %v963 = vadd.f32 %v707, 1.0
        %v964 = vadd.f32 %v708, 1.0
        %v965 = vadd.f32 %v709, 1.0
        %v966 = vadd.f32 %v710, 1.0
        %v967 = vadd.f32 %v711, 1.0
        %v968 = vadd.f32 %v712, 1.0
        %v969 = vadd.f32 %v713, 1.0
        %v970 = vadd.f32 %v714, 1.0
        %v971 = vadd.f32 %v715, 1.0
        %v972 = vadd.f32 %v716, 1.0
        %v973 = vadd.f32 %v717, 1.0
        %v974 = vadd.f32 %v718, 1.0
        %v975 = vadd.f32 %v719, 1.0
        %v976 = vadd.f32 %v720, 1.0
        %v977 = vadd.f32 %v721, 1.0
        %v978 = vadd.f32 %v722, 1.0
        %v979 = vadd.f32 %v723, 1.0
        %v980 = vadd.f32 %v724, 1.0
        %v981 = vadd.f32 %v725, 1.0
        %v982 = vadd.f32 %v726, 1.0
        %v983 = vadd.f32 %v727, 1.0
        %v984 = vadd.f32 %v728, 1.0
        %v985 = vadd.f32 %v729, 1.0
        %v986 = vadd.f32 %v730, 1.0
        %v987 = vadd.f32 %v731, 1.0
        %v988 = vadd.f32 %v732, 1.0
        %v989 = vadd.f32 %v733, 1.0
        %v990 = vadd.f32 %v734, 1.0
        %v991 = vadd.f32 %v735, 1.0
        %v992 = vadd.f32 %v736, 1.0
        %v993 = vadd.f32 %v737, 1.0
        %v994 = vadd.f32 %v738, 1.0
        %v995 = vadd.f32 %v739, 1.0
        %v996 = vadd.f32 %v740, 1.0
        %v997 = vadd.f32 %v741, 1.0
        %v998 = vadd.f32 %v742, 1.0
        %v999 = vadd.f32 %v743, 1.0
        %v1000 = vadd.f32 %v744, 1.0
        %v1001 = vadd.f32 %v745, 1.0
        %v1002 = vadd.f32 %v746, 1.0
        %v1003 = vadd.f32 %v747, 1.0
        %v1004 = vadd.f32 %v748, 1.0
        %v1005 = vadd.f32 %v749, 1.0
        %v1006 = vadd.f32 %v750, 1.0
        %v1007 = vadd.f32 %v751, 1.0
        %v1008 = vadd.f32 %v752, 1.0
        %v1009 = vadd.f32 %v753, 1.0
        %v1010 = vadd.f32 %v754, 1.0
        %v1011 = vadd.f32 %v755, 1.0
        %v1012 = vadd.f32 %v756, 1.0
        %v1013 = vadd.f32 %v757, 1.0
        %v1014 = vadd.f32 %v758, 1.0
        %v1015 = vadd.f32 %v759, 1.0
        %v1016 = vadd.f32 %v760, 1.0
        %v1017 = vadd.f32 %v761, 1.0
        %v1018 = vadd.f32 %v762, 1.0
        %v1019 = vadd.f32 %v763, 1.0
        %v1020 = vadd.f32 %v764, 1.0
        %v1021 = vadd.f32 %v765, 1.0
        %v1022 = vadd.f32 %v766, 1.0
        %v1023 = vadd.f32 %v767, 1.0
        %v1024 = vadd.f32 %v768, 1.0
        %v1025 = vadd.f32 %v769, 1.0
        %v1026 = vadd.f32 %v770, 1.0
        %v1027 = vadd.f32 %v771, 1.0
        %v1028 = vadd.f32 %v772, 1.0
        %v1029 = vadd.f32 %v773, 1.0
        %v1030 = vadd.f32 %v774, 1.0
        %v1031 = vadd.f32 %v775, 1.0
        %v1032 = vadd.f32 %v776, 1.0
        %v1033 = vadd.f32 %v777, 1.0
        %v1034 = vadd.f32 %v778, 1.0
        %v1035 = vadd.f32 %v779, 1.0
        %v1036 = vadd.f32 %v780, 1.0
        %v1037 = vadd.f32 %v781, 1.0
        %v1038 = vadd.f32 %v782, 1.0
        %v1039 = vadd.f32 %v783, 1.0
        %v1040 = vadd.f32 %v784, 1.0
        %v1041 = vadd.f32 %v785, 1.0
        %v1042 = vadd.f32 %v786, 1.0
        %v1043 = vadd.f32 %v787, 1.0
        %v1044 = vadd.f32 %v788, 1.0
        %v1045 = vadd.f32 %v789, 1.0
        %v1046 = vadd.f32 %v790, 1.0
        %v1047 = vadd.f32 %v791, 1.0
        %v1048 = vadd.f32 %v792, 1.0
        %v1049 = vadd.f32 %v793, 1.0
        %v1050 = vadd.f32 %v794, 1.0
        %v1051 = vadd.f32 %v795, 1.0
        %v1052 = vadd.f32 %v796, 1.0
        %v1053 = vadd.f32 %v797, 1.0
        %v1054 = vadd.f32 %v798, 1.0
        %v1055 = vadd.f32 %v799, 1.0
        %v1056 = vadd.f32 %v800, 1.0
        %v1057 = vadd.f32 %v801, 1.0
        %v1058 = vadd.f32 %v802, 1.0
        %v1059 = vadd.f32 %v803, 1.0
        %v1060 = vadd.f32 %v804, 1.0
        %v1061 = vadd.f32 %v805, 1.0
        %v1062 = vadd.f32 %v806, 1.0
        %v1063 = vadd.f32 %v807, 1.0
        %v1064 = vadd.f32 %v808, 1.0
        %v1065 = vadd.f32 %v809, 1.0
        %v1066 = vadd.f32 %v810, 1.0
        %v1067 = vadd.f32 %v811, 1.0
        %v1068 = vadd.f32 %v812, 1.0
        %v1069 = vadd.f32 %v813, 1.0
        %v1070 = vadd.f32 %v814, 1.0
        %v1071 = vadd.f32 %v815, 1.0
        %v1072 = vadd.f32 %v816, 1.0
        %v1073 = vadd.f32 %v817, 1.0
        %v1074 = vadd.f32 %v818, 1.0
        %v1075 = vadd.f32 %v819, 1.0
        %v1076 = vadd.f32 %v820, 1.0
        %v1077 = vadd.f32 %v821, 1.0
        %v1078 = vadd.f32 %v822, 1.0
        %v1079 = vadd.f32 %v823, 1.0
        %v1080 = vadd.f32 %v824, 1.0
        %v1081 = vadd.f32 %v825, 1.0
        %v1082 = vadd.f32 %v826, 1.0
        %v1083 = vadd.f32 %v827, 1.0
        %v1084 = vadd.f32 %v828, 1.0
        %v1085 = vadd.f32 %v829, 1.0
        %v1086 = vadd.f32 %v830, 1.0
        %v1087 = vadd.f32 %v831, 1.0
        %v1088 = vadd.f32 %v832, 1.0
        %v1089 = vadd.f32 %v833, 1.0
        %v1090 = vadd.f32 %v834, 1.0
        %v1091 = vadd.f32 %v835, 1.0
        %v1092 = vadd.f32 %v836, 1.0
        %v1093 = vadd.f32 %v837, 1.0
        %v1094 = vadd.f32 %v838, 1.0
        %v1095 = vadd.f32 %v839, 1.0
        %v1096 = vadd.f32 %v840, 1.0
        %v1097 = vadd.f32 %v841, 1.0
        %v1098 = vadd.f32 %v842, 1.0
        %v1099 = vadd.f32 %v843, 1.0
        %v1100 = vadd.f32 %v844, 1.0
        %v1101 = vadd.f32 %v845, 1.0
        %v1102 = vadd.f32 %v846, 1.0
        %v1103 = vadd.f32 %v847, 1.0
        %v1104 = vadd.f32 %v848, 1.0
        %v1105 = vadd.f32 %v849, 1.0
        %v1106 = vadd.f32 %v850, 1.0
        %v1107 = vadd.f32 %v851, 1.0
        %v1108 = vadd.f32 %v852, 1.0
        %v1109 = vadd.f32 %v853, 1.0
        %v1110 = vadd.f32 %v854, 1.0
        %v1111 = vadd.f32 %v855, 1.0
        %v1112 = vadd.f32 %v856, 1.0
        %v1113 = vadd.f32 %v857, 1.0
        %v1114 = vadd.f32 %v858, 1.0
        %v1115 = vadd.f32 %v859, 1.0
        %v1116 = vadd.f32 %v860, 1.0
        %v1117 = vadd.f32 %v861, 1.0
        %v1118 = vadd.f32 %v862, 1.0
        %v1119 = vadd.f32 %v863, 1.0
        %v1120 = vadd.f32 %v864, 1.0
        %v1121 = vadd.f32 %v865, 1.0
        %v1122 = vadd.f32 %v866, 1.0
        %v1123 = vadd.f32 %v867, 1.0
        %v1124 = vadd.f32 %v868, 1.0
        %v1125 = vadd.f32 %v869, 1.0
        %v1126 = vadd.f32 %v870, 1.0
        %v1127 = vadd.f32 %v871, 1.0
        %v1128 = vadd.f32 %v872, 1.0
        %v1129 = vadd.f32 %v873, 1.0
        %v1130 = vadd.f32 %v874, 1.0
        %v1131 = vadd.f32 %v875, 1.0
        %v1132 = vadd.f32 %v876, 1.0
        %v1133 = vadd.f32 %v877, 1.0
        %v1134 = vadd.f32 %v878, 1.0
        %v1135 = vadd.f32 %v879, 1.0
        %v1136 = vadd.f32 %v880, 1.0
        %v1137 = vadd.f32 %v881, 1.0
        %v1138 = vadd.f32 %v882, 1.0
        %v1139 = vadd.f32 %v883, 1.0
        %v1140 = vadd.f32 %v884, 1.0
        %v1141 = vadd.f32 %v885, 1.0
        %v1142 = vadd.f32 %v886, 1.0
        %v1143 = vadd.f32 %v887, 1.0
        %v1144 = vadd.f32 %v888, 1.0
        %v1145 = vadd.f32 %v889, 1.0
        %v1146 = vadd.f32 %v890, 1.0
        %v1147 = vadd.f32 %v891, 1.0
        %v1148 = vadd.f32 %v892, 1.0
        %v1149 = vadd.f32 %v893, 1.0
        %v1150 = vadd.f32 %v894, 1.0
        %v1151 = vadd.f32 %v895, 1.0
        %v1152 = vadd.f32 %v896, 1.0
        %v1153 = vadd.f32 %v897, 1.0
        %v1154 = vadd.f32 %v898, 1.0
        %v1155 = vadd.f32 %v899, 1.0
        %v1156 = vadd.f32 %v900, 1.0
        %v1157 = vadd.f32 %v901, 1.0
        %v1158 = vadd.f32 %v902, 1.0
        %v1159 = vadd.f32 %v903, 1.0
        %v1160 = vadd.f32 %v904, 1.0
        %v1161 = vadd.f32 %v905, 1.0
        %v1162 = vmul.f32 %v906, 0.5
        %v1163 = vmul.f32 %v907, 0.5
        %v1164 = vmul.f32 %v908, 0.5
        %v1165 = vmul.f32 %v909, 0.5
        %v1166 = vmul.f32 %v910, 0.5
        %v1167 = vmul.f32 %v911, 0.5
        %v1168 = vmul.f32 %v912, 0.5
        %v1169 = vmul.f32 %v913, 0.5
        %v1170 = vmul.f32 %v914, 0.5
        %v1171 = vmul.f32 %v915, 0.5
        %v1172 = vmul.f32 %v916, 0.5
        %v1173 = vmul.f32 %v917, 0.5
        %v1174 = vmul.f32 %v918, 0.5
        %v1175 = vmul.f32 %v919, 0.5
        %v1176 = vmul.f32 %v920, 0.5
        %v1177 = vmul.f32 %v921, 0.5
        %v1178 = vmul.f32 %v922, 0.5
        %v1179 = vmul.f32 %v923, 0.5
        %v1180 = vmul.f32 %v924, 0.5
        %v1181 = vmul.f32 %v925, 0.5
        %v1182 = vmul.f32 %v926, 0.5
        %v1183 = vmul.f32 %v927, 0.5
        %v1184 = vmul.f32 %v928, 0.5
        %v1185 = vmul.f32 %v929, 0.5
        %v1186 = vmul.f32 %v930, 0.5
        %v1187 = vmul.f32 %v931, 0.5
        %v1188 = vmul.f32 %v932, 0.5
        %v1189 = vmul.f32 %v933, 0.5
        %v1190 = vmul.f32 %v934, 0.5
        %v1191 = vmul.f32 %v935, 0.5
        %v1192 = vmul.f32 %v936, 0.5
        %v1193 = vmul.f32 %v937, 0.5
        %v1194 = vmul.f32 %v938, 0.5
        %v1195 = vmul.f32 %v939, 0.5
        %v1196 = vmul.f32 %v940, 0.5
        %v1197 = vmul.f32 %v941, 0.5
        %v1198 = vmul.f32 %v942, 0.5
        %v1199 = vmul.f32 %v943, 0.5
        %v1200 = vmul.f32 %v944, 0.5
        %v1201 = vmul.f32 %v945, 0.5
        %v1202 = vmul.f32 %v946, 0.5
        %v1203 = vmul.f32 %v947, 0.5
        %v1204 = vmul.f32 %v948, 0.5
        %v1205 = vmul.f32 %v949, 0.5
        %v1206 = vmul.f32 %v950, 0.5
        %v1207 = vmul.f32 %v951, 0.5
        %v1208 = vmul.f32 %v952, 0.5
        %v1209 = vmul.f32 %v953, 0.5
        %v1210 = vmul.f32 %v954, 0.5
        %v1211 = vmul.f32 %v955, 0.5
        %v1212 = vmul.f32 %v956, 0.5
        %v1213 = vmul.f32 %v957, 0.5
        %v1214 = vmul.f32 %v958, 0.5
        %v1215 = vmul.f32 %v959, 0.5
        %v1216 = vmul.f32 %v960, 0.5
        %v1217 = vmul.f32 %v961, 0.5
        %v1218 = vmul.f32 %v962, 0.5
        %v1219 = vmul.f32 %v963, 0.5
        %v1220 = vmul.f32 %v964, 0.5
        %v1221 = vmul.f32 %v965, 0.5
        %v1222 = vmul.f32 %v966, 0.5
        %v1223 = vmul.f32 %v967, 0.5
        %v1224 = vmul.f32 %v968, 0.5
        %v1225 = vmul.f32 %v969, 0.5
        %v1226 = vmul.f32 %v970, 0.5
        %v1227 = vmul.f32 %v971, 0.5
        %v1228 = vmul.f32 %v972, 0.5
        %v1229 = vmul.f32 %v973, 0.5
        %v1230 = vmul.f32 %v974, 0.5
        %v1231 = vmul.f32 %v975, 0.5
        %v1232 = vmul.f32 %v976, 0.5
        %v1233 = vmul.f32 %v977, 0.5
        %v1234 = vmul.f32 %v978, 0.5
        %v1235 = vmul.f32 %v979, 0.5
        %v1236 = vmul.f32 %v980, 0.5
        %v1237 = vmul.f32 %v981, 0.5
        %v1238 = vmul.f32 %v982, 0.5
        %v1239 = vmul.f32 %v983, 0.5
        %v1240 = vmul.f32 %v984, 0.5
        %v1241 = vmul.f32 %v985, 0.5
        %v1242 = vmul.f32 %v986, 0.5
        %v1243 = vmul.f32 %v987, 0.5
        %v1244 = vmul.f32 %v988, 0.5
        %v1245 = vmul.f32 %v989, 0.5
        %v1246 = vmul.f32 %v990, 0.5
        %v1247 = vmul.f32 %v991, 0.5
        %v1248 = vmul.f32 %v992, 0.5
        %v1249 = vmul.f32 %v993, 0.5
        %v1250 = vmul.f32 %v994, 0.5
        %v1251 = vmul.f32 %v995, 0.5
        %v1252 = vmul.f32 %v996, 0.5
        %v1253 = vmul.f32 %v997, 0.5
        %v1254 = vmul.f32 %v998, 0.5
        %v1255 = vmul.f32 %v999, 0.5
        %v1256 = vmul.f32 %v1000, 0.5
        %v1257 = vmul.f32 %v1001, 0.5
        %v1258 = vmul.f32 %v1002, 0.5
        %v1259 = vmul.f32 %v1003, 0.5
        %v1260 = vmul.f32 %v1004, 0.5
        %v1261 = vmul.f32 %v1005, 0.5
        %v1262 = vmul.f32 %v1006, 0.5
        %v1263 = vmul.f32 %v1007, 0.5
        %v1264 = vmul.f32 %v1008, 0.5
        %v1265 = vmul.f32 %v1009, 0.5
        %v1266 = vmul.f32 %v1010, 0.5
        %v1267 = vmul.f32 %v1011, 0.5
        %v1268 = vmul.f32 %v1012, 0.5
        %v1269 = vmul.f32 %v1013, 0.5
        %v1270 = vmul.f32 %v1014, 0.5
        %v1271 = vmul.f32 %v1015, 0.5
        %v1272 = vmul.f32 %v1016, 0.5
        %v1273 = vmul.f32 %v1017, 0.5
        %v1274 = vmul.f32 %v1018, 0.5
        %v1275 = vmul.f32 %v1019, 0.5
        %v1276 = vmul.f32 %v1020, 0.5
        %v1277 = vmul.f32 %v1021, 0.5
        %v1278 = vmul.f32 %v1022, 0.5
        %v1279 = vmul.f32 %v1023, 0.5
        %v1280 = vmul.f32 %v1024, 0.5
        %v1281 = vmul.f32 %v1025, 0.5
        %v1282 = vmul.f32 %v1026, 0.5
        %v1283 = vmul.f32 %v1027, 0.5
        %v1284 = vmul.f32 %v1028, 0.5
        %v1285 = vmul.f32 %v1029, 0.5
        %v1286 = vmul.f32 %v1030, 0.5
        %v1287 = vmul.f32 %v1031, 0.5
        %v1288 = vmul.f32 %v1032, 0.5
        %v1289 = vmul.f32 %v1033, 0.5
        %v1290 = vmul.f32 %v1034, 0.5
        %v1291 = vmul.f32 %v1035, 0.5
        %v1292 = vmul.f32 %v1036, 0.5
        %v1293 = vmul.f32 %v1037, 0.5
        %v1294 = vmul.f32 %v1038, 0.5
        %v1295 = vmul.f32 %v1039, 0.5
        %v1296 = vmul.f32 %v1040, 0.5
        %v1297 = vmul.f32 %v1041, 0.5
        %v1298 = vmul.f32 %v1042, 0.5
        %v1299 = vmul.f32 %v1043, 0.5
        %v1300 = vmul.f32 %v1044, 0.5
        %v1301 = vmul.f32 %v1045, 0.5
        %v1302 = vmul.f32 %v1046, 0.5
        %v1303 = vmul.f32 %v1047, 0.5
        %v1304 = vmul.f32 %v1048, 0.5
        %v1305 = vmul.f32 %v1049, 0.5
        %v1306 = vmul.f32 %v1050, 0.5
        %v1307 = vmul.f32 %v1051, 0.5
        %v1308 = vmul.f32 %v1052, 0.5
        %v1309 = vmul.f32 %v1053, 0.5
        %v1310 = vmul.f32 %v1054, 0.5
        %v1311 = vmul.f32 %v1055, 0.5
        %v1312 = vmul.f32 %v1056, 0.5
        %v1313 = vmul.f32 %v1057, 0.5
        %v1314 = vmul.f32 %v1058, 0.5
        %v1315 = vmul.f32 %v1059, 0.5
        %v1316 = vmul.f32 %v1060, 0.5
        %v1317 = vmul.f32 %v1061, 0.5
        %v1318 = vmul.f32 %v1062, 0.5
        %v1319 = vmul.f32 %v1063, 0.5
        %v1320 = vmul.f32 %v1064, 0.5
        %v1321 = vmul.f32 %v1065, 0.5
        %v1322 = vmul.f32 %v1066, 0.5
        %v1323 = vmul.f32 %v1067, 0.5
        %v1324 = vmul.f32 %v1068, 0.5
        %v1325 = vmul.f32 %v1069, 0.5
        %v1326 = vmul.f32 %v1070, 0.5
        %v1327 = vmul.f32 %v1071, 0.5
        %v1328 = vmul.f32 %v1072, 0.5
        %v1329 = vmul.f32 %v1073, 0.5
        %v1330 = vmul.f32 %v1074, 0.5
        %v1331 = vmul.f32 %v1075, 0.5
        %v1332 = vmul.f32 %v1076, 0.5
        %v1333 = vmul.f32 %v1077, 0.5
        %v1334 = vmul.f32 %v1078, 0.5
        %v1335 = vmul.f32 %v1079, 0.5
        %v1336 = vmul.f32 %v1080, 0.5
        %v1337 = vmul.f32 %v1081, 0.5
        %v1338 = vmul.f32 %v1082, 0.5
        %v1339 = vmul.f32 %v1083, 0.5
        %v1340 = vmul.f32 %v1084, 0.5
        %v1341 = vmul.f32 %v1085, 0.5
        %v1342 = vmul.f32 %v1086, 0.5
        %v1343 = vmul.f32 %v1087, 0.5
        %v1344 = vmul.f32 %v1088, 0.5
        %v1345 = vmul.f32 %v1089, 0.5
        %v1346 = vmul.f32 %v1090, 0.5
        %v1347 = vmul.f32 %v1091, 0.5
        %v1348 = vmul.f32 %v1092, 0.5
        %v1349 = vmul.f32 %v1093, 0.5
        %v1350 = vmul.f32 %v1094, 0.5
        %v1351 = vmul.f32 %v1095, 0.5
        %v1352 = vmul.f32 %v1096, 0.5
        %v1353 = vmul.f32 %v1097, 0.5
        %v1354 = vmul.f32 %v1098, 0.5
        %v1355 = vmul.f32 %v1099, 0.5
        %v1356 = vmul.f32 %v1100, 0.5
        %v1357 = vmul.f32 %v1101, 0.5
        %v1358 = vmul.f32 %v1102, 0.5
        %v1359 = vmul.f32 %v1103, 0.5
        %v1360 = vmul.f32 %v1104, 0.5
        %v1361 = vmul.f32 %v1105, 0.5
        %v1362 = vmul.f32 %v1106, 0.5
        %v1363 = vmul.f32 %v1107, 0.5
        %v1364 = vmul.f32 %v1108, 0.5
        %v1365 = vmul.f32 %v1109, 0.5
        %v1366 = vmul.f32 %v1110, 0.5
        %v1367 = vmul.f32 %v1111, 0.5
        %v1368 = vmul.f32 %v1112, 0.5
        %v1369 = vmul.f32 %v1113, 0.5
        %v1370 = vmul.f32 %v1114, 0.5
        %v1371 = vmul.f32 %v1115, 0.5
        %v1372 = vmul.f32 %v1116, 0.5
        %v1373 = vmul.f32 %v1117, 0.5
        %v1374 = vmul.f32 %v1118, 0.5
        %v1375 = vmul.f32 %v1119, 0.5
        %v1376 = vmul.f32 %v1120, 0.5
        %v1377 = vmul.f32 %v1121, 0.5
        %v1378 = vmul.f32 %v1122, 0.5
        %v1379 = vmul.f32 %v1123, 0.5
        %v1380 = vmul.f32 %v1124, 0.5
        %v1381 = vmul.f32 %v1125, 0.5
        %v1382 = vmul.f32 %v1126, 0.5
        %v1383 = vmul.f32 %v1127, 0.5
        %v1384 = vmul.f32 %v1128, 0.5
        %v1385 = vmul.f32 %v1129, 0.5
        %v1386 = vmul.f32 %v1130, 0.5
        %v1387 = vmul.f32 %v1131, 0.5
        %v1388 = vmul.f32 %v1132, 0.5
        %v1389 = vmul.f32 %v1133, 0.5
        %v1390 = vmul.f32 %v1134, 0.5
        %v1391 = vmul.f32 %v1135, 0.5
        %v1392 = vmul.f32 %v1136, 0.5
        %v1393 = vmul.f32 %v1137, 0.5
        %v1394 = vmul.f32 %v1138, 0.5
        %v1395 = vmul.f32 %v1139, 0.5
        %v1396 = vmul.f32 %v1140, 0.5
        %v1397 = vmul.f32 %v1141, 0.5
        %v1398 = vmul.f32 %v1142, 0.5
        %v1399 = vmul.f32 %v1143, 0.5
        %v1400 = vmul.f32 %v1144, 0.5
        %v1401 = vmul.f32 %v1145, 0.5
        %v1402 = vmul.f32 %v1146, 0.5
        %v1403 = vmul.f32 %v1147, 0.5
        %v1404 = vmul.f32 %v1148, 0.5
        %v1405 = vmul.f32 %v1149, 0.5
        %v1406 = vmul.f32 %v1150, 0.5
        %v1407 = vmul.f32 %v1151, 0.5
        %v1408 = vmul.f32 %v1152, 0.5
        %v1409 = vmul.f32 %v1153, 0.5
        %v1410 = vmul.f32 %v1154, 0.5
        %v1411 = vmul.f32 %v1155, 0.5
        %v1412 = vmul.f32 %v1156, 0.5
        %v1413 = vmul.f32 %v1157, 0.5
        %v1414 = vmul.f32 %v1158, 0.5
        %v1415 = vmul.f32 %v1159, 0.5
        %v1416 = vmul.f32 %v1160, 0.5
        %v1417 = vmul.f32 %v1161, 0.5
        %v1418 = vmul.f32 %v138, 1.6666666
        %v1419 = vmul.f32 %v139, 1.6666666
        %v1420 = vmul.f32 %v140, 1.6666666
        %v1421 = vmul.f32 %v141, 1.6666666
        %v1422 = vmul.f32 %v142, 1.6666666
        %v1423 = vmul.f32 %v143, 1.6666666
        %v1424 = vmul.f32 %v144, 1.6666666
        %v1425 = vmul.f32 %v145, 1.6666666
        %v1426 = vmul.f32 %v146, 1.6666666
        %v1427 = vmul.f32 %v147, 1.6666666
        %v1428 = vmul.f32 %v148, 1.6666666
        %v1429 = vmul.f32 %v149, 1.6666666
        %v1430 = vmul.f32 %v150, 1.6666666
        %v1431 = vmul.f32 %v151, 1.6666666
        %v1432 = vmul.f32 %v152, 1.6666666
        %v1433 = vmul.f32 %v153, 1.6666666
        %v1434 = vmul.f32 %v154, 1.6666666
        %v1435 = vmul.f32 %v155, 1.6666666
        %v1436 = vmul.f32 %v156, 1.6666666
        %v1437 = vmul.f32 %v157, 1.6666666
        %v1438 = vmul.f32 %v158, 1.6666666
        %v1439 = vmul.f32 %v159, 1.6666666
        %v1440 = vmul.f32 %v160, 1.6666666
        %v1441 = vmul.f32 %v161, 1.6666666
        %v1442 = vmul.f32 %v162, 1.6666666
        %v1443 = vmul.f32 %v163, 1.6666666
        %v1444 = vmul.f32 %v164, 1.6666666
        %v1445 = vmul.f32 %v165, 1.6666666
        %v1446 = vmul.f32 %v166, 1.6666666
        %v1447 = vmul.f32 %v167, 1.6666666
        %v1448 = vmul.f32 %v168, 1.6666666
        %v1449 = vmul.f32 %v169, 1.6666666
        %v1450 = vmul.f32 %v170, 1.6666666
        %v1451 = vmul.f32 %v171, 1.6666666
        %v1452 = vmul.f32 %v172, 1.6666666
        %v1453 = vmul.f32 %v173, 1.6666666
        %v1454 = vmul.f32 %v174, 1.6666666
        %v1455 = vmul.f32 %v175, 1.6666666
        %v1456 = vmul.f32 %v176, 1.6666666
        %v1457 = vmul.f32 %v177, 1.6666666
        %v1458 = vmul.f32 %v178, 1.6666666
        %v1459 = vmul.f32 %v179, 1.6666666
        %v1460 = vmul.f32 %v180, 1.6666666
        %v1461 = vmul.f32 %v181, 1.6666666
        %v1462 = vmul.f32 %v182, 1.6666666
        %v1463 = vmul.f32 %v183, 1.6666666
        %v1464 = vmul.f32 %v184, 1.6666666
        %v1465 = vmul.f32 %v185, 1.6666666
        %v1466 = vmul.f32 %v186, 1.6666666
        %v1467 = vmul.f32 %v187, 1.6666666
        %v1468 = vmul.f32 %v188, 1.6666666
        %v1469 = vmul.f32 %v189, 1.6666666
        %v1470 = vmul.f32 %v190, 1.6666666
        %v1471 = vmul.f32 %v191, 1.6666666
        %v1472 = vmul.f32 %v192, 1.6666666
        %v1473 = vmul.f32 %v193, 1.6666666
        %v1474 = vmul.f32 %v194, 1.6666666
        %v1475 = vmul.f32 %v195, 1.6666666
        %v1476 = vmul.f32 %v196, 1.6666666
        %v1477 = vmul.f32 %v197, 1.6666666
        %v1478 = vmul.f32 %v198, 1.6666666
        %v1479 = vmul.f32 %v199, 1.6666666
        %v1480 = vmul.f32 %v200, 1.6666666
        %v1481 = vmul.f32 %v201, 1.6666666
        %v1482 = vmul.f32 %v202, 1.6666666
        %v1483 = vmul.f32 %v203, 1.6666666
        %v1484 = vmul.f32 %v204, 1.6666666
        %v1485 = vmul.f32 %v205, 1.6666666
        %v1486 = vmul.f32 %v206, 1.6666666
        %v1487 = vmul.f32 %v207, 1.6666666
        %v1488 = vmul.f32 %v208, 1.6666666
        %v1489 = vmul.f32 %v209, 1.6666666
        %v1490 = vmul.f32 %v210, 1.6666666
        %v1491 = vmul.f32 %v211, 1.6666666
        %v1492 = vmul.f32 %v212, 1.6666666
        %v1493 = vmul.f32 %v213, 1.6666666
        %v1494 = vmul.f32 %v214, 1.6666666
        %v1495 = vmul.f32 %v215, 1.6666666
        %v1496 = vmul.f32 %v216, 1.6666666
        %v1497 = vmul.f32 %v217, 1.6666666
        %v1498 = vmul.f32 %v218, 1.6666666
        %v1499 = vmul.f32 %v219, 1.6666666
        %v1500 = vmul.f32 %v220, 1.6666666
        %v1501 = vmul.f32 %v221, 1.6666666
        %v1502 = vmul.f32 %v222, 1.6666666
        %v1503 = vmul.f32 %v223, 1.6666666
        %v1504 = vmul.f32 %v224, 1.6666666
        %v1505 = vmul.f32 %v225, 1.6666666
        %v1506 = vmul.f32 %v226, 1.6666666
        %v1507 = vmul.f32 %v227, 1.6666666
        %v1508 = vmul.f32 %v228, 1.6666666
        %v1509 = vmul.f32 %v229, 1.6666666
        %v1510 = vmul.f32 %v230, 1.6666666
        %v1511 = vmul.f32 %v231, 1.6666666
        %v1512 = vmul.f32 %v232, 1.6666666
        %v1513 = vmul.f32 %v233, 1.6666666
        %v1514 = vmul.f32 %v234, 1.6666666
        %v1515 = vmul.f32 %v235, 1.6666666
        %v1516 = vmul.f32 %v236, 1.6666666
        %v1517 = vmul.f32 %v237, 1.6666666
        %v1518 = vmul.f32 %v238, 1.6666666
        %v1519 = vmul.f32 %v239, 1.6666666
        %v1520 = vmul.f32 %v240, 1.6666666
        %v1521 = vmul.f32 %v241, 1.6666666
        %v1522 = vmul.f32 %v242, 1.6666666
        %v1523 = vmul.f32 %v243, 1.6666666
        %v1524 = vmul.f32 %v244, 1.6666666
        %v1525 = vmul.f32 %v245, 1.6666666
        %v1526 = vmul.f32 %v246, 1.6666666
        %v1527 = vmul.f32 %v247, 1.6666666
        %v1528 = vmul.f32 %v248, 1.6666666
        %v1529 = vmul.f32 %v249, 1.6666666
        %v1530 = vmul.f32 %v250, 1.6666666
        %v1531 = vmul.f32 %v251, 1.6666666
        %v1532 = vmul.f32 %v252, 1.6666666
        %v1533 = vmul.f32 %v253, 1.6666666
        %v1534 = vmul.f32 %v254, 1.6666666
        %v1535 = vmul.f32 %v255, 1.6666666
        %v1536 = vmul.f32 %v256, 1.6666666
        %v1537 = vmul.f32 %v257, 1.6666666
        %v1538 = vmul.f32 %v258, 1.6666666
        %v1539 = vmul.f32 %v259, 1.6666666
        %v1540 = vmul.f32 %v260, 1.6666666
        %v1541 = vmul.f32 %v261, 1.6666666
        %v1542 = vmul.f32 %v262, 1.6666666
        %v1543 = vmul.f32 %v263, 1.6666666
        %v1544 = vmul.f32 %v264, 1.6666666
        %v1545 = vmul.f32 %v265, 1.6666666
        %v1546 = vmul.f32 %v266, 1.6666666
        %v1547 = vmul.f32 %v267, 1.6666666
        %v1548 = vmul.f32 %v268, 1.6666666
        %v1549 = vmul.f32 %v269, 1.6666666
        %v1550 = vmul.f32 %v270, 1.6666666
        %v1551 = vmul.f32 %v271, 1.6666666
        %v1552 = vmul.f32 %v272, 1.6666666
        %v1553 = vmul.f32 %v273, 1.6666666
        %v1554 = vmul.f32 %v274, 1.6666666
        %v1555 = vmul.f32 %v275, 1.6666666
        %v1556 = vmul.f32 %v276, 1.6666666
        %v1557 = vmul.f32 %v277, 1.6666666
        %v1558 = vmul.f32 %v278, 1.6666666
        %v1559 = vmul.f32 %v279, 1.6666666
        %v1560 = vmul.f32 %v280, 1.6666666
        %v1561 = vmul.f32 %v281, 1.6666666
        %v1562 = vmul.f32 %v282, 1.6666666
        %v1563 = vmul.f32 %v283, 1.6666666
        %v1564 = vmul.f32 %v284, 1.6666666
        %v1565 = vmul.f32 %v285, 1.6666666
        %v1566 = vmul.f32 %v286, 1.6666666
        %v1567 = vmul.f32 %v287, 1.6666666
        %v1568 = vmul.f32 %v288, 1.6666666
        %v1569 = vmul.f32 %v289, 1.6666666
        %v1570 = vmul.f32 %v290, 1.6666666
        %v1571 = vmul.f32 %v291, 1.6666666
        %v1572 = vmul.f32 %v292, 1.6666666
        %v1573 = vmul.f32 %v293, 1.6666666
        %v1574 = vmul.f32 %v294, 1.6666666
        %v1575 = vmul.f32 %v295, 1.6666666
        %v1576 = vmul.f32 %v296, 1.6666666
        %v1577 = vmul.f32 %v297, 1.6666666
        %v1578 = vmul.f32 %v298, 1.6666666
        %v1579 = vmul.f32 %v299, 1.6666666
        %v1580 = vmul.f32 %v300, 1.6666666
        %v1581 = vmul.f32 %v301, 1.6666666
        %v1582 = vmul.f32 %v302, 1.6666666
        %v1583 = vmul.f32 %v303, 1.6666666
        %v1584 = vmul.f32 %v304, 1.6666666
        %v1585 = vmul.f32 %v305, 1.6666666
        %v1586 = vmul.f32 %v306, 1.6666666
        %v1587 = vmul.f32 %v307, 1.6666666
        %v1588 = vmul.f32 %v308, 1.6666666
        %v1589 = vmul.f32 %v309, 1.6666666
        %v1590 = vmul.f32 %v310, 1.6666666
        %v1591 = vmul.f32 %v311, 1.6666666
        %v1592 = vmul.f32 %v312, 1.6666666
        %v1593 = vmul.f32 %v313, 1.6666666
        %v1594 = vmul.f32 %v314, 1.6666666
        %v1595 = vmul.f32 %v315, 1.6666666
        %v1596 = vmul.f32 %v316, 1.6666666
        %v1597 = vmul.f32 %v317, 1.6666666
        %v1598 = vmul.f32 %v318, 1.6666666
        %v1599 = vmul.f32 %v319, 1.6666666
        %v1600 = vmul.f32 %v320, 1.6666666
        %v1601 = vmul.f32 %v321, 1.6666666
        %v1602 = vmul.f32 %v322, 1.6666666
        %v1603 = vmul.f32 %v323, 1.6666666
        %v1604 = vmul.f32 %v324, 1.6666666
        %v1605 = vmul.f32 %v325, 1.6666666
        %v1606 = vmul.f32 %v326, 1.6666666
        %v1607 = vmul.f32 %v327, 1.6666666
        %v1608 = vmul.f32 %v328, 1.6666666
        %v1609 = vmul.f32 %v329, 1.6666666
        %v1610 = vmul.f32 %v330, 1.6666666
        %v1611 = vmul.f32 %v331, 1.6666666
        %v1612 = vmul.f32 %v332, 1.6666666
        %v1613 = vmul.f32 %v333, 1.6666666
        %v1614 = vmul.f32 %v334, 1.6666666
        %v1615 = vmul.f32 %v335, 1.6666666
        %v1616 = vmul.f32 %v336, 1.6666666
        %v1617 = vmul.f32 %v337, 1.6666666
        %v1618 = vmul.f32 %v338, 1.6666666
        %v1619 = vmul.f32 %v339, 1.6666666
        %v1620 = vmul.f32 %v340, 1.6666666
        %v1621 = vmul.f32 %v341, 1.6666666
        %v1622 = vmul.f32 %v342, 1.6666666
        %v1623 = vmul.f32 %v343, 1.6666666
        %v1624 = vmul.f32 %v344, 1.6666666
        %v1625 = vmul.f32 %v345, 1.6666666
        %v1626 = vmul.f32 %v346, 1.6666666
        %v1627 = vmul.f32 %v347, 1.6666666
        %v1628 = vmul.f32 %v348, 1.6666666
        %v1629 = vmul.f32 %v349, 1.6666666
        %v1630 = vmul.f32 %v350, 1.6666666
        %v1631 = vmul.f32 %v351, 1.6666666
        %v1632 = vmul.f32 %v352, 1.6666666
        %v1633 = vmul.f32 %v353, 1.6666666
        %v1634 = vmul.f32 %v354, 1.6666666
        %v1635 = vmul.f32 %v355, 1.6666666
        %v1636 = vmul.f32 %v356, 1.6666666
        %v1637 = vmul.f32 %v357, 1.6666666
        %v1638 = vmul.f32 %v358, 1.6666666
        %v1639 = vmul.f32 %v359, 1.6666666
        %v1640 = vmul.f32 %v360, 1.6666666
        %v1641 = vmul.f32 %v361, 1.6666666
        %v1642 = vmul.f32 %v362, 1.6666666
        %v1643 = vmul.f32 %v363, 1.6666666
        %v1644 = vmul.f32 %v364, 1.6666666
        %v1645 = vmul.f32 %v365, 1.6666666
        %v1646 = vmul.f32 %v366, 1.6666666
        %v1647 = vmul.f32 %v367, 1.6666666
        %v1648 = vmul.f32 %v368, 1.6666666
        %v1649 = vmul.f32 %v369, 1.6666666
        %v1650 = vmul.f32 %v370, 1.6666666
        %v1651 = vmul.f32 %v371, 1.6666666
        %v1652 = vmul.f32 %v372, 1.6666666
        %v1653 = vmul.f32 %v373, 1.6666666
        %v1654 = vmul.f32 %v374, 1.6666666
        %v1655 = vmul.f32 %v375, 1.6666666
        %v1656 = vmul.f32 %v376, 1.6666666
        %v1657 = vmul.f32 %v377, 1.6666666
        %v1658 = vmul.f32 %v378, 1.6666666
        %v1659 = vmul.f32 %v379, 1.6666666
        %v1660 = vmul.f32 %v380, 1.6666666
        %v1661 = vmul.f32 %v381, 1.6666666
        %v1662 = vmul.f32 %v382, 1.6666666
        %v1663 = vmul.f32 %v383, 1.6666666
        %v1664 = vmul.f32 %v384, 1.6666666
        %v1665 = vmul.f32 %v385, 1.6666666
        %v1666 = vmul.f32 %v386, 1.6666666
        %v1667 = vmul.f32 %v387, 1.6666666
        %v1668 = vmul.f32 %v388, 1.6666666
        %v1669 = vmul.f32 %v389, 1.6666666
        %v1670 = vmul.f32 %v390, 1.6666666
        %v1671 = vmul.f32 %v391, 1.6666666
        %v1672 = vmul.f32 %v392, 1.6666666
        %v1673 = vmul.f32 %v393, 1.6666666
        %v1674 = vmul.f32 %v1418, %v1162
        %v1675 = vmul.f32 %v1419, %v1163
        %v1676 = vmul.f32 %v1420, %v1164
        %v1677 = vmul.f32 %v1421, %v1165
        %v1678 = vmul.f32 %v1422, %v1166
        %v1679 = vmul.f32 %v1423, %v1167
        %v1680 = vmul.f32 %v1424, %v1168
        %v1681 = vmul.f32 %v1425, %v1169
        %v1682 = vmul.f32 %v1426, %v1170
        %v1683 = vmul.f32 %v1427, %v1171
        %v1684 = vmul.f32 %v1428, %v1172
        %v1685 = vmul.f32 %v1429, %v1173
        %v1686 = vmul.f32 %v1430, %v1174
        %v1687 = vmul.f32 %v1431, %v1175
        %v1688 = vmul.f32 %v1432, %v1176
        %v1689 = vmul.f32 %v1433, %v1177
        %v1690 = vmul.f32 %v1434, %v1178
        %v1691 = vmul.f32 %v1435, %v1179
        %v1692 = vmul.f32 %v1436, %v1180
        %v1693 = vmul.f32 %v1437, %v1181
        %v1694 = vmul.f32 %v1438, %v1182
        %v1695 = vmul.f32 %v1439, %v1183
        %v1696 = vmul.f32 %v1440, %v1184
        %v1697 = vmul.f32 %v1441, %v1185
        %v1698 = vmul.f32 %v1442, %v1186
        %v1699 = vmul.f32 %v1443, %v1187
        %v1700 = vmul.f32 %v1444, %v1188
        %v1701 = vmul.f32 %v1445, %v1189
        %v1702 = vmul.f32 %v1446, %v1190
        %v1703 = vmul.f32 %v1447, %v1191
        %v1704 = vmul.f32 %v1448, %v1192
        %v1705 = vmul.f32 %v1449, %v1193
        %v1706 = vmul.f32 %v1450, %v1194
        %v1707 = vmul.f32 %v1451, %v1195
        %v1708 = vmul.f32 %v1452, %v1196
        %v1709 = vmul.f32 %v1453, %v1197
        %v1710 = vmul.f32 %v1454, %v1198
        %v1711 = vmul.f32 %v1455, %v1199
        %v1712 = vmul.f32 %v1456, %v1200
        %v1713 = vmul.f32 %v1457, %v1201
        %v1714 = vmul.f32 %v1458, %v1202
        %v1715 = vmul.f32 %v1459, %v1203
        %v1716 = vmul.f32 %v1460, %v1204
        %v1717 = vmul.f32 %v1461, %v1205
        %v1718 = vmul.f32 %v1462, %v1206
        %v1719 = vmul.f32 %v1463, %v1207
        %v1720 = vmul.f32 %v1464, %v1208
        %v1721 = vmul.f32 %v1465, %v1209
        %v1722 = vmul.f32 %v1466, %v1210
        %v1723 = vmul.f32 %v1467, %v1211
        %v1724 = vmul.f32 %v1468, %v1212
        %v1725 = vmul.f32 %v1469, %v1213
        %v1726 = vmul.f32 %v1470, %v1214
        %v1727 = vmul.f32 %v1471, %v1215
        %v1728 = vmul.f32 %v1472, %v1216
        %v1729 = vmul.f32 %v1473, %v1217
        %v1730 = vmul.f32 %v1474, %v1218
        %v1731 = vmul.f32 %v1475, %v1219
        %v1732 = vmul.f32 %v1476, %v1220
        %v1733 = vmul.f32 %v1477, %v1221
        %v1734 = vmul.f32 %v1478, %v1222
        %v1735 = vmul.f32 %v1479, %v1223
        %v1736 = vmul.f32 %v1480, %v1224
        %v1737 = vmul.f32 %v1481, %v1225
        %v1738 = vmul.f32 %v1482, %v1226
        %v1739 = vmul.f32 %v1483, %v1227
        %v1740 = vmul.f32 %v1484, %v1228
        %v1741 = vmul.f32 %v1485, %v1229
        %v1742 = vmul.f32 %v1486, %v1230
        %v1743 = vmul.f32 %v1487, %v1231
        %v1744 = vmul.f32 %v1488, %v1232
        %v1745 = vmul.f32 %v1489, %v1233
        %v1746 = vmul.f32 %v1490, %v1234
        %v1747 = vmul.f32 %v1491, %v1235
        %v1748 = vmul.f32 %v1492, %v1236
        %v1749 = vmul.f32 %v1493, %v1237
        %v1750 = vmul.f32 %v1494, %v1238
        %v1751 = vmul.f32 %v1495, %v1239
        %v1752 = vmul.f32 %v1496, %v1240
        %v1753 = vmul.f32 %v1497, %v1241
        %v1754 = vmul.f32 %v1498, %v1242
        %v1755 = vmul.f32 %v1499, %v1243
        %v1756 = vmul.f32 %v1500, %v1244
        %v1757 = vmul.f32 %v1501, %v1245
        %v1758 = vmul.f32 %v1502, %v1246
        %v1759 = vmul.f32 %v1503, %v1247
        %v1760 = vmul.f32 %v1504, %v1248
        %v1761 = vmul.f32 %v1505, %v1249
        %v1762 = vmul.f32 %v1506, %v1250
        %v1763 = vmul.f32 %v1507, %v1251
        %v1764 = vmul.f32 %v1508, %v1252
        %v1765 = vmul.f32 %v1509, %v1253
        %v1766 = vmul.f32 %v1510, %v1254
        %v1767 = vmul.f32 %v1511, %v1255
        %v1768 = vmul.f32 %v1512, %v1256
        %v1769 = vmul.f32 %v1513, %v1257
        %v1770 = vmul.f32 %v1514, %v1258
        %v1771 = vmul.f32 %v1515, %v1259
        %v1772 = vmul.f32 %v1516, %v1260
        %v1773 = vmul.f32 %v1517, %v1261
        %v1774 = vmul.f32 %v1518, %v1262
        %v1775 = vmul.f32 %v1519, %v1263
        %v1776 = vmul.f32 %v1520, %v1264
        %v1777 = vmul.f32 %v1521, %v1265
        %v1778 = vmul.f32 %v1522, %v1266
        %v1779 = vmul.f32 %v1523, %v1267
        %v1780 = vmul.f32 %v1524, %v1268
        %v1781 = vmul.f32 %v1525, %v1269
        %v1782 = vmul.f32 %v1526, %v1270
        %v1783 = vmul.f32 %v1527, %v1271
        %v1784 = vmul.f32 %v1528, %v1272
        %v1785 = vmul.f32 %v1529, %v1273
        %v1786 = vmul.f32 %v1530, %v1274
        %v1787 = vmul.f32 %v1531, %v1275
        %v1788 = vmul.f32 %v1532, %v1276
        %v1789 = vmul.f32 %v1533, %v1277
        %v1790 = vmul.f32 %v1534, %v1278
        %v1791 = vmul.f32 %v1535, %v1279
        %v1792 = vmul.f32 %v1536, %v1280
        %v1793 = vmul.f32 %v1537, %v1281
        %v1794 = vmul.f32 %v1538, %v1282
        %v1795 = vmul.f32 %v1539, %v1283
        %v1796 = vmul.f32 %v1540, %v1284
        %v1797 = vmul.f32 %v1541, %v1285
        %v1798 = vmul.f32 %v1542, %v1286
        %v1799 = vmul.f32 %v1543, %v1287
        %v1800 = vmul.f32 %v1544, %v1288
        %v1801 = vmul.f32 %v1545, %v1289
        %v1802 = vmul.f32 %v1546, %v1290
        %v1803 = vmul.f32 %v1547, %v1291
        %v1804 = vmul.f32 %v1548, %v1292
        %v1805 = vmul.f32 %v1549, %v1293
        %v1806 = vmul.f32 %v1550, %v1294
        %v1807 = vmul.f32 %v1551, %v1295
        %v1808 = vmul.f32 %v1552, %v1296
        %v1809 = vmul.f32 %v1553, %v1297
        %v1810 = vmul.f32 %v1554, %v1298
        %v1811 = vmul.f32 %v1555, %v1299
        %v1812 = vmul.f32 %v1556, %v1300
        %v1813 = vmul.f32 %v1557, %v1301
        %v1814 = vmul.f32 %v1558, %v1302
        %v1815 = vmul.f32 %v1559, %v1303
        %v1816 = vmul.f32 %v1560, %v1304
        %v1817 = vmul.f32 %v1561, %v1305
        %v1818 = vmul.f32 %v1562, %v1306
        %v1819 = vmul.f32 %v1563, %v1307
        %v1820 = vmul.f32 %v1564, %v1308
        %v1821 = vmul.f32 %v1565, %v1309
        %v1822 = vmul.f32 %v1566, %v1310
        %v1823 = vmul.f32 %v1567, %v1311
        %v1824 = vmul.f32 %v1568, %v1312
        %v1825 = vmul.f32 %v1569, %v1313
        %v1826 = vmul.f32 %v1570, %v1314
        %v1827 = vmul.f32 %v1571, %v1315
        %v1828 = vmul.f32 %v1572, %v1316
        %v1829 = vmul.f32 %v1573, %v1317
        %v1830 = vmul.f32 %v1574, %v1318
        %v1831 = vmul.f32 %v1575, %v1319
        %v1832 = vmul.f32 %v1576, %v1320
        %v1833 = vmul.f32 %v1577, %v1321
        %v1834 = vmul.f32 %v1578, %v1322
        %v1835 = vmul.f32 %v1579, %v1323
        %v1836 = vmul.f32 %v1580, %v1324
        %v1837 = vmul.f32 %v1581, %v1325
        %v1838 = vmul.f32 %v1582, %v1326
        %v1839 = vmul.f32 %v1583, %v1327
        %v1840 = vmul.f32 %v1584, %v1328
        %v1841 = vmul.f32 %v1585, %v1329
        %v1842 = vmul.f32 %v1586, %v1330
        %v1843 = vmul.f32 %v1587, %v1331
        %v1844 = vmul.f32 %v1588, %v1332
        %v1845 = vmul.f32 %v1589, %v1333
        %v1846 = vmul.f32 %v1590, %v1334
        %v1847 = vmul.f32 %v1591, %v1335
        %v1848 = vmul.f32 %v1592, %v1336
        %v1849 = vmul.f32 %v1593, %v1337
        %v1850 = vmul.f32 %v1594, %v1338
        %v1851 = vmul.f32 %v1595, %v1339
        %v1852 = vmul.f32 %v1596, %v1340
        %v1853 = vmul.f32 %v1597, %v1341
        %v1854 = vmul.f32 %v1598, %v1342
        %v1855 = vmul.f32 %v1599, %v1343
        %v1856 = vmul.f32 %v1600, %v1344
        %v1857 = vmul.f32 %v1601, %v1345
        %v1858 = vmul.f32 %v1602, %v1346
        %v1859 = vmul.f32 %v1603, %v1347
        %v1860 = vmul.f32 %v1604, %v1348
        %v1861 = vmul.f32 %v1605, %v1349
        %v1862 = vmul.f32 %v1606, %v1350
        %v1863 = vmul.f32 %v1607, %v1351
        %v1864 = vmul.f32 %v1608, %v1352
        %v1865 = vmul.f32 %v1609, %v1353
        %v1866 = vmul.f32 %v1610, %v1354
        %v1867 = vmul.f32 %v1611, %v1355
        %v1868 = vmul.f32 %v1612, %v1356
        %v1869 = vmul.f32 %v1613, %v1357
        %v1870 = vmul.f32 %v1614, %v1358
        %v1871 = vmul.f32 %v1615, %v1359
        %v1872 = vmul.f32 %v1616, %v1360
        %v1873 = vmul.f32 %v1617, %v1361
        %v1874 = vmul.f32 %v1618, %v1362
        %v1875 = vmul.f32 %v1619, %v1363
        %v1876 = vmul.f32 %v1620, %v1364
        %v1877 = vmul.f32 %v1621, %v1365
        %v1878 = vmul.f32 %v1622, %v1366
        %v1879 = vmul.f32 %v1623, %v1367
        %v1880 = vmul.f32 %v1624, %v1368
        %v1881 = vmul.f32 %v1625, %v1369
        %v1882 = vmul.f32 %v1626, %v1370
        %v1883 = vmul.f32 %v1627, %v1371
        %v1884 = vmul.f32 %v1628, %v1372
        %v1885 = vmul.f32 %v1629, %v1373
        %v1886 = vmul.f32 %v1630, %v1374
        %v1887 = vmul.f32 %v1631, %v1375
        %v1888 = vmul.f32 %v1632, %v1376
        %v1889 = vmul.f32 %v1633, %v1377
        %v1890 = vmul.f32 %v1634, %v1378
        %v1891 = vmul.f32 %v1635, %v1379
        %v1892 = vmul.f32 %v1636, %v1380
        %v1893 = vmul.f32 %v1637, %v1381
        %v1894 = vmul.f32 %v1638, %v1382
        %v1895 = vmul.f32 %v1639, %v1383
        %v1896 = vmul.f32 %v1640, %v1384
        %v1897 = vmul.f32 %v1641, %v1385
        %v1898 = vmul.f32 %v1642, %v1386
        %v1899 = vmul.f32 %v1643, %v1387
        %v1900 = vmul.f32 %v1644, %v1388
        %v1901 = vmul.f32 %v1645, %v1389
        %v1902 = vmul.f32 %v1646, %v1390
        %v1903 = vmul.f32 %v1647, %v1391
        %v1904 = vmul.f32 %v1648, %v1392
        %v1905 = vmul.f32 %v1649, %v1393
        %v1906 = vmul.f32 %v1650, %v1394
        %v1907 = vmul.f32 %v1651, %v1395
        %v1908 = vmul.f32 %v1652, %v1396
        %v1909 = vmul.f32 %v1653, %v1397
        %v1910 = vmul.f32 %v1654, %v1398
        %v1911 = vmul.f32 %v1655, %v1399
        %v1912 = vmul.f32 %v1656, %v1400
        %v1913 = vmul.f32 %v1657, %v1401
        %v1914 = vmul.f32 %v1658, %v1402
        %v1915 = vmul.f32 %v1659, %v1403
        %v1916 = vmul.f32 %v1660, %v1404
        %v1917 = vmul.f32 %v1661, %v1405
        %v1918 = vmul.f32 %v1662, %v1406
        %v1919 = vmul.f32 %v1663, %v1407
        %v1920 = vmul.f32 %v1664, %v1408
        %v1921 = vmul.f32 %v1665, %v1409
        %v1922 = vmul.f32 %v1666, %v1410
        %v1923 = vmul.f32 %v1667, %v1411
        %v1924 = vmul.f32 %v1668, %v1412
        %v1925 = vmul.f32 %v1669, %v1413
        %v1926 = vmul.f32 %v1670, %v1414
        %v1927 = vmul.f32 %v1671, %v1415
        %v1928 = vmul.f32 %v1672, %v1416
        %v1929 = vmul.f32 %v1673, %v1417
        %1930 = vst [vmem:[%s135] sm:$0xff] %v1674
        %1931 = vst [vmem:[%s135 + $0x8] sm:$0xff] %v1675
        %1932 = vst [vmem:[%s135 + $0x10] sm:$0xff] %v1676
        %1933 = vst [vmem:[%s135 + $0x18] sm:$0xff] %v1677
        %1934 = vst [vmem:[%s135 + $0x20] sm:$0xff] %v1678
        %1935 = vst [vmem:[%s135 + $0x28] sm:$0xff] %v1679
        %1936 = vst [vmem:[%s135 + $0x30] sm:$0xff] %v1680
        %1937 = vst [vmem:[%s135 + $0x38] sm:$0xff] %v1681
        %1938 = vst [vmem:[%s135 + $0x40] sm:$0xff] %v1682
        %1939 = vst [vmem:[%s135 + $0x48] sm:$0xff] %v1683
        %1940 = vst [vmem:[%s135 + $0x50] sm:$0xff] %v1684
        %1941 = vst [vmem:[%s135 + $0x58] sm:$0xff] %v1685
        %1942 = vst [vmem:[%s135 + $0x60] sm:$0xff] %v1686
        %1943 = vst [vmem:[%s135 + $0x68] sm:$0xff] %v1687
        %1944 = vst [vmem:[%s135 + $0x70] sm:$0xff] %v1688
        %1945 = vst [vmem:[%s135 + $0x78] sm:$0xff] %v1689
        %1946 = vst [vmem:[%s135 + $0x80] sm:$0xff] %v1690
        %1947 = vst [vmem:[%s135 + $0x88] sm:$0xff] %v1691
        %1948 = vst [vmem:[%s135 + $0x90] sm:$0xff] %v1692
        %1949 = vst [vmem:[%s135 + $0x98] sm:$0xff] %v1693
        %1950 = vst [vmem:[%s135 + $0xa0] sm:$0xff] %v1694
        %1951 = vst [vmem:[%s135 + $0xa8] sm:$0xff] %v1695
        %1952 = vst [vmem:[%s135 + $0xb0] sm:$0xff] %v1696
        %1953 = vst [vmem:[%s135 + $0xb8] sm:$0xff] %v1697
        %1954 = vst [vmem:[%s135 + $0xc0] sm:$0xff] %v1698
        %1955 = vst [vmem:[%s135 + $0xc8] sm:$0xff] %v1699
        %1956 = vst [vmem:[%s135 + $0xd0] sm:$0xff] %v1700
        %1957 = vst [vmem:[%s135 + $0xd8] sm:$0xff] %v1701
        %1958 = vst [vmem:[%s135 + $0xe0] sm:$0xff] %v1702
        %1959 = vst [vmem:[%s135 + $0xe8] sm:$0xff] %v1703
        %1960 = vst [vmem:[%s135 + $0xf0] sm:$0xff] %v1704
        %1961 = vst [vmem:[%s135 + $0xf8] sm:$0xff] %v1705
        %1962 = vst [vmem:[%s135 + $0x100] sm:$0xff] %v1706
        %1963 = vst [vmem:[%s135 + $0x108] sm:$0xff] %v1707
        %1964 = vst [vmem:[%s135 + $0x110] sm:$0xff] %v1708
        %1965 = vst [vmem:[%s135 + $0x118] sm:$0xff] %v1709
        %1966 = vst [vmem:[%s135 + $0x120] sm:$0xff] %v1710
        %1967 = vst [vmem:[%s135 + $0x128] sm:$0xff] %v1711
        %1968 = vst [vmem:[%s135 + $0x130] sm:$0xff] %v1712
        %1969 = vst [vmem:[%s135 + $0x138] sm:$0xff] %v1713
        %1970 = vst [vmem:[%s135 + $0x140] sm:$0xff] %v1714
        %1971 = vst [vmem:[%s135 + $0x148] sm:$0xff] %v1715
        %1972 = vst [vmem:[%s135 + $0x150] sm:$0xff] %v1716
        %1973 = vst [vmem:[%s135 + $0x158] sm:$0xff] %v1717
        %1974 = vst [vmem:[%s135 + $0x160] sm:$0xff] %v1718
        %1975 = vst [vmem:[%s135 + $0x168] sm:$0xff] %v1719
        %1976 = vst [vmem:[%s135 + $0x170] sm:$0xff] %v1720
        %1977 = vst [vmem:[%s135 + $0x178] sm:$0xff] %v1721
        %1978 = vst [vmem:[%s135 + $0x180] sm:$0xff] %v1722
        %1979 = vst [vmem:[%s135 + $0x188] sm:$0xff] %v1723
        %1980 = vst [vmem:[%s135 + $0x190] sm:$0xff] %v1724
        %1981 = vst [vmem:[%s135 + $0x198] sm:$0xff] %v1725
        %1982 = vst [vmem:[%s135 + $0x1a0] sm:$0xff] %v1726
        %1983 = vst [vmem:[%s135 + $0x1a8] sm:$0xff] %v1727
        %1984 = vst [vmem:[%s135 + $0x1b0] sm:$0xff] %v1728
        %1985 = vst [vmem:[%s135 + $0x1b8] sm:$0xff] %v1729
        %1986 = vst [vmem:[%s135 + $0x1c0] sm:$0xff] %v1730
        %1987 = vst [vmem:[%s135 + $0x1c8] sm:$0xff] %v1731
        %1988 = vst [vmem:[%s135 + $0x1d0] sm:$0xff] %v1732
        %1989 = vst [vmem:[%s135 + $0x1d8] sm:$0xff] %v1733
        %1990 = vst [vmem:[%s135 + $0x1e0] sm:$0xff] %v1734
        %1991 = vst [vmem:[%s135 + $0x1e8] sm:$0xff] %v1735
        %1992 = vst [vmem:[%s135 + $0x1f0] sm:$0xff] %v1736
        %1993 = vst [vmem:[%s135 + $0x1f8] sm:$0xff] %v1737
        %1994 = vst [vmem:[%s135 + $0x200] sm:$0xff] %v1738
        %1995 = vst [vmem:[%s135 + $0x208] sm:$0xff] %v1739
        %1996 = vst [vmem:[%s135 + $0x210] sm:$0xff] %v1740
        %1997 = vst [vmem:[%s135 + $0x218] sm:$0xff] %v1741
        %1998 = vst [vmem:[%s135 + $0x220] sm:$0xff] %v1742
        %1999 = vst [vmem:[%s135 + $0x228] sm:$0xff] %v1743
        %2000 = vst [vmem:[%s135 + $0x230] sm:$0xff] %v1744
        %2001 = vst [vmem:[%s135 + $0x238] sm:$0xff] %v1745
        %2002 = vst [vmem:[%s135 + $0x240] sm:$0xff] %v1746
        %2003 = vst [vmem:[%s135 + $0x248] sm:$0xff] %v1747
        %2004 = vst [vmem:[%s135 + $0x250] sm:$0xff] %v1748
        %2005 = vst [vmem:[%s135 + $0x258] sm:$0xff] %v1749
        %2006 = vst [vmem:[%s135 + $0x260] sm:$0xff] %v1750
        %2007 = vst [vmem:[%s135 + $0x268] sm:$0xff] %v1751
        %2008 = vst [vmem:[%s135 + $0x270] sm:$0xff] %v1752
        %2009 = vst [vmem:[%s135 + $0x278] sm:$0xff] %v1753
        %2010 = vst [vmem:[%s135 + $0x280] sm:$0xff] %v1754
        %2011 = vst [vmem:[%s135 + $0x288] sm:$0xff] %v1755
        %2012 = vst [vmem:[%s135 + $0x290] sm:$0xff] %v1756
        %2013 = vst [vmem:[%s135 + $0x298] sm:$0xff] %v1757
        %2014 = vst [vmem:[%s135 + $0x2a0] sm:$0xff] %v1758
        %2015 = vst [vmem:[%s135 + $0x2a8] sm:$0xff] %v1759
        %2016 = vst [vmem:[%s135 + $0x2b0] sm:$0xff] %v1760
        %2017 = vst [vmem:[%s135 + $0x2b8] sm:$0xff] %v1761
        %2018 = vst [vmem:[%s135 + $0x2c0] sm:$0xff] %v1762
        %2019 = vst [vmem:[%s135 + $0x2c8] sm:$0xff] %v1763
        %2020 = vst [vmem:[%s135 + $0x2d0] sm:$0xff] %v1764
        %2021 = vst [vmem:[%s135 + $0x2d8] sm:$0xff] %v1765
        %2022 = vst [vmem:[%s135 + $0x2e0] sm:$0xff] %v1766
        %2023 = vst [vmem:[%s135 + $0x2e8] sm:$0xff] %v1767
        %2024 = vst [vmem:[%s135 + $0x2f0] sm:$0xff] %v1768
        %2025 = vst [vmem:[%s135 + $0x2f8] sm:$0xff] %v1769
        %2026 = vst [vmem:[%s135 + $0x300] sm:$0xff] %v1770
        %2027 = vst [vmem:[%s135 + $0x308] sm:$0xff] %v1771
        %2028 = vst [vmem:[%s135 + $0x310] sm:$0xff] %v1772
        %2029 = vst [vmem:[%s135 + $0x318] sm:$0xff] %v1773
        %2030 = vst [vmem:[%s135 + $0x320] sm:$0xff] %v1774
        %2031 = vst [vmem:[%s135 + $0x328] sm:$0xff] %v1775
        %2032 = vst [vmem:[%s135 + $0x330] sm:$0xff] %v1776
        %2033 = vst [vmem:[%s135 + $0x338] sm:$0xff] %v1777
        %2034 = vst [vmem:[%s135 + $0x340] sm:$0xff] %v1778
        %2035 = vst [vmem:[%s135 + $0x348] sm:$0xff] %v1779
        %2036 = vst [vmem:[%s135 + $0x350] sm:$0xff] %v1780
        %2037 = vst [vmem:[%s135 + $0x358] sm:$0xff] %v1781
        %2038 = vst [vmem:[%s135 + $0x360] sm:$0xff] %v1782
        %2039 = vst [vmem:[%s135 + $0x368] sm:$0xff] %v1783
        %2040 = vst [vmem:[%s135 + $0x370] sm:$0xff] %v1784
        %2041 = vst [vmem:[%s135 + $0x378] sm:$0xff] %v1785
        %2042 = vst [vmem:[%s135 + $0x380] sm:$0xff] %v1786
        %2043 = vst [vmem:[%s135 + $0x388] sm:$0xff] %v1787
        %2044 = vst [vmem:[%s135 + $0x390] sm:$0xff] %v1788
        %2045 = vst [vmem:[%s135 + $0x398] sm:$0xff] %v1789
        %2046 = vst [vmem:[%s135 + $0x3a0] sm:$0xff] %v1790
        %2047 = vst [vmem:[%s135 + $0x3a8] sm:$0xff] %v1791
        %2048 = vst [vmem:[%s135 + $0x3b0] sm:$0xff] %v1792
        %2049 = vst [vmem:[%s135 + $0x3b8] sm:$0xff] %v1793
        %2050 = vst [vmem:[%s135 + $0x3c0] sm:$0xff] %v1794
        %2051 = vst [vmem:[%s135 + $0x3c8] sm:$0xff] %v1795
        %2052 = vst [vmem:[%s135 + $0x3d0] sm:$0xff] %v1796
        %2053 = vst [vmem:[%s135 + $0x3d8] sm:$0xff] %v1797
        %2054 = vst [vmem:[%s135 + $0x3e0] sm:$0xff] %v1798
        %2055 = vst [vmem:[%s135 + $0x3e8] sm:$0xff] %v1799
        %2056 = vst [vmem:[%s135 + $0x3f0] sm:$0xff] %v1800
        %2057 = vst [vmem:[%s135 + $0x3f8] sm:$0xff] %v1801
        %2058 = vst [vmem:[%s135 + $0x400] sm:$0xff] %v1802
        %2059 = vst [vmem:[%s135 + $0x408] sm:$0xff] %v1803
        %2060 = vst [vmem:[%s135 + $0x410] sm:$0xff] %v1804
        %2061 = vst [vmem:[%s135 + $0x418] sm:$0xff] %v1805
        %2062 = vst [vmem:[%s135 + $0x420] sm:$0xff] %v1806
        %2063 = vst [vmem:[%s135 + $0x428] sm:$0xff] %v1807
        %2064 = vst [vmem:[%s135 + $0x430] sm:$0xff] %v1808
        %2065 = vst [vmem:[%s135 + $0x438] sm:$0xff] %v1809
        %2066 = vst [vmem:[%s135 + $0x440] sm:$0xff] %v1810
        %2067 = vst [vmem:[%s135 + $0x448] sm:$0xff] %v1811
        %2068 = vst [vmem:[%s135 + $0x450] sm:$0xff] %v1812
        %2069 = vst [vmem:[%s135 + $0x458] sm:$0xff] %v1813
        %2070 = vst [vmem:[%s135 + $0x460] sm:$0xff] %v1814
        %2071 = vst [vmem:[%s135 + $0x468] sm:$0xff] %v1815
        %2072 = vst [vmem:[%s135 + $0x470] sm:$0xff] %v1816
        %2073 = vst [vmem:[%s135 + $0x478] sm:$0xff] %v1817
        %2074 = vst [vmem:[%s135 + $0x480] sm:$0xff] %v1818
        %2075 = vst [vmem:[%s135 + $0x488] sm:$0xff] %v1819
        %2076 = vst [vmem:[%s135 + $0x490] sm:$0xff] %v1820
        %2077 = vst [vmem:[%s135 + $0x498] sm:$0xff] %v1821
        %2078 = vst [vmem:[%s135 + $0x4a0] sm:$0xff] %v1822
        %2079 = vst [vmem:[%s135 + $0x4a8] sm:$0xff] %v1823
        %2080 = vst [vmem:[%s135 + $0x4b0] sm:$0xff] %v1824
        %2081 = vst [vmem:[%s135 + $0x4b8] sm:$0xff] %v1825
        %2082 = vst [vmem:[%s135 + $0x4c0] sm:$0xff] %v1826
        %2083 = vst [vmem:[%s135 + $0x4c8] sm:$0xff] %v1827
        %2084 = vst [vmem:[%s135 + $0x4d0] sm:$0xff] %v1828
        %2085 = vst [vmem:[%s135 + $0x4d8] sm:$0xff] %v1829
        %2086 = vst [vmem:[%s135 + $0x4e0] sm:$0xff] %v1830
        %2087 = vst [vmem:[%s135 + $0x4e8] sm:$0xff] %v1831
        %2088 = vst [vmem:[%s135 + $0x4f0] sm:$0xff] %v1832
        %2089 = vst [vmem:[%s135 + $0x4f8] sm:$0xff] %v1833
        %2090 = vst [vmem:[%s135 + $0x500] sm:$0xff] %v1834
        %2091 = vst [vmem:[%s135 + $0x508] sm:$0xff] %v1835
        %2092 = vst [vmem:[%s135 + $0x510] sm:$0xff] %v1836
        %2093 = vst [vmem:[%s135 + $0x518] sm:$0xff] %v1837
        %2094 = vst [vmem:[%s135 + $0x520] sm:$0xff] %v1838
        %2095 = vst [vmem:[%s135 + $0x528] sm:$0xff] %v1839
        %2096 = vst [vmem:[%s135 + $0x530] sm:$0xff] %v1840
        %2097 = vst [vmem:[%s135 + $0x538] sm:$0xff] %v1841
        %2098 = vst [vmem:[%s135 + $0x540] sm:$0xff] %v1842
        %2099 = vst [vmem:[%s135 + $0x548] sm:$0xff] %v1843
        %2100 = vst [vmem:[%s135 + $0x550] sm:$0xff] %v1844
        %2101 = vst [vmem:[%s135 + $0x558] sm:$0xff] %v1845
        %2102 = vst [vmem:[%s135 + $0x560] sm:$0xff] %v1846
        %2103 = vst [vmem:[%s135 + $0x568] sm:$0xff] %v1847
        %2104 = vst [vmem:[%s135 + $0x570] sm:$0xff] %v1848
        %2105 = vst [vmem:[%s135 + $0x578] sm:$0xff] %v1849
        %2106 = vst [vmem:[%s135 + $0x580] sm:$0xff] %v1850
        %2107 = vst [vmem:[%s135 + $0x588] sm:$0xff] %v1851
        %2108 = vst [vmem:[%s135 + $0x590] sm:$0xff] %v1852
        %2109 = vst [vmem:[%s135 + $0x598] sm:$0xff] %v1853
        %2110 = vst [vmem:[%s135 + $0x5a0] sm:$0xff] %v1854
        %2111 = vst [vmem:[%s135 + $0x5a8] sm:$0xff] %v1855
        %2112 = vst [vmem:[%s135 + $0x5b0] sm:$0xff] %v1856
        %2113 = vst [vmem:[%s135 + $0x5b8] sm:$0xff] %v1857
        %2114 = vst [vmem:[%s135 + $0x5c0] sm:$0xff] %v1858
        %2115 = vst [vmem:[%s135 + $0x5c8] sm:$0xff] %v1859
        %2116 = vst [vmem:[%s135 + $0x5d0] sm:$0xff] %v1860
        %2117 = vst [vmem:[%s135 + $0x5d8] sm:$0xff] %v1861
        %2118 = vst [vmem:[%s135 + $0x5e0] sm:$0xff] %v1862
        %2119 = vst [vmem:[%s135 + $0x5e8] sm:$0xff] %v1863
        %2120 = vst [vmem:[%s135 + $0x5f0] sm:$0xff] %v1864
        %2121 = vst [vmem:[%s135 + $0x5f8] sm:$0xff] %v1865
        %2122 = vst [vmem:[%s135 + $0x600] sm:$0xff] %v1866
        %2123 = vst [vmem:[%s135 + $0x608] sm:$0xff] %v1867
        %2124 = vst [vmem:[%s135 + $0x610] sm:$0xff] %v1868
        %2125 = vst [vmem:[%s135 + $0x618] sm:$0xff] %v1869
        %2126 = vst [vmem:[%s135 + $0x620] sm:$0xff] %v1870
        %2127 = vst [vmem:[%s135 + $0x628] sm:$0xff] %v1871
        %2128 = vst [vmem:[%s135 + $0x630] sm:$0xff] %v1872
        %2129 = vst [vmem:[%s135 + $0x638] sm:$0xff] %v1873
        %2130 = vst [vmem:[%s135 + $0x640] sm:$0xff] %v1874
        %2131 = vst [vmem:[%s135 + $0x648] sm:$0xff] %v1875
        %2132 = vst [vmem:[%s135 + $0x650] sm:$0xff] %v1876
        %2133 = vst [vmem:[%s135 + $0x658] sm:$0xff] %v1877
        %2134 = vst [vmem:[%s135 + $0x660] sm:$0xff] %v1878
        %2135 = vst [vmem:[%s135 + $0x668] sm:$0xff] %v1879
        %2136 = vst [vmem:[%s135 + $0x670] sm:$0xff] %v1880
        %2137 = vst [vmem:[%s135 + $0x678] sm:$0xff] %v1881
        %2138 = vst [vmem:[%s135 + $0x680] sm:$0xff] %v1882
        %2139 = vst [vmem:[%s135 + $0x688] sm:$0xff] %v1883
        %2140 = vst [vmem:[%s135 + $0x690] sm:$0xff] %v1884
        %2141 = vst [vmem:[%s135 + $0x698] sm:$0xff] %v1885
        %2142 = vst [vmem:[%s135 + $0x6a0] sm:$0xff] %v1886
        %2143 = vst [vmem:[%s135 + $0x6a8] sm:$0xff] %v1887
        %2144 = vst [vmem:[%s135 + $0x6b0] sm:$0xff] %v1888
        %2145 = vst [vmem:[%s135 + $0x6b8] sm:$0xff] %v1889
        %2146 = vst [vmem:[%s135 + $0x6c0] sm:$0xff] %v1890
        %2147 = vst [vmem:[%s135 + $0x6c8] sm:$0xff] %v1891
        %2148 = vst [vmem:[%s135 + $0x6d0] sm:$0xff] %v1892
        %2149 = vst [vmem:[%s135 + $0x6d8] sm:$0xff] %v1893
        %2150 = vst [vmem:[%s135 + $0x6e0] sm:$0xff] %v1894
        %2151 = vst [vmem:[%s135 + $0x6e8] sm:$0xff] %v1895
        %2152 = vst [vmem:[%s135 + $0x6f0] sm:$0xff] %v1896
        %2153 = vst [vmem:[%s135 + $0x6f8] sm:$0xff] %v1897
        %2154 = vst [vmem:[%s135 + $0x700] sm:$0xff] %v1898
        %2155 = vst [vmem:[%s135 + $0x708] sm:$0xff] %v1899
        %2156 = vst [vmem:[%s135 + $0x710] sm:$0xff] %v1900
        %2157 = vst [vmem:[%s135 + $0x718] sm:$0xff] %v1901
        %2158 = vst [vmem:[%s135 + $0x720] sm:$0xff] %v1902
        %2159 = vst [vmem:[%s135 + $0x728] sm:$0xff] %v1903
        %2160 = vst [vmem:[%s135 + $0x730] sm:$0xff] %v1904
        %2161 = vst [vmem:[%s135 + $0x738] sm:$0xff] %v1905
        %2162 = vst [vmem:[%s135 + $0x740] sm:$0xff] %v1906
        %2163 = vst [vmem:[%s135 + $0x748] sm:$0xff] %v1907
        %2164 = vst [vmem:[%s135 + $0x750] sm:$0xff] %v1908
        %2165 = vst [vmem:[%s135 + $0x758] sm:$0xff] %v1909
        %2166 = vst [vmem:[%s135 + $0x760] sm:$0xff] %v1910
        %2167 = vst [vmem:[%s135 + $0x768] sm:$0xff] %v1911
        %2168 = vst [vmem:[%s135 + $0x770] sm:$0xff] %v1912
        %2169 = vst [vmem:[%s135 + $0x778] sm:$0xff] %v1913
        %2170 = vst [vmem:[%s135 + $0x780] sm:$0xff] %v1914
        %2171 = vst [vmem:[%s135 + $0x788] sm:$0xff] %v1915
        %2172 = vst [vmem:[%s135 + $0x790] sm:$0xff] %v1916
        %2173 = vst [vmem:[%s135 + $0x798] sm:$0xff] %v1917
        %2174 = vst [vmem:[%s135 + $0x7a0] sm:$0xff] %v1918
        %2175 = vst [vmem:[%s135 + $0x7a8] sm:$0xff] %v1919
        %2176 = vst [vmem:[%s135 + $0x7b0] sm:$0xff] %v1920
        %2177 = vst [vmem:[%s135 + $0x7b8] sm:$0xff] %v1921
        %2178 = vst [vmem:[%s135 + $0x7c0] sm:$0xff] %v1922
        %2179 = vst [vmem:[%s135 + $0x7c8] sm:$0xff] %v1923
        %2180 = vst [vmem:[%s135 + $0x7d0] sm:$0xff] %v1924
        %2181 = vst [vmem:[%s135 + $0x7d8] sm:$0xff] %v1925
        %2182 = vst [vmem:[%s135 + $0x7e0] sm:$0xff] %v1926
        %2183 = vst [vmem:[%s135 + $0x7e8] sm:$0xff] %v1927
        %2184 = vst [vmem:[%s135 + $0x7f0] sm:$0xff] %v1928
        %2185 = vst [vmem:[%s135 + $0x7f8] sm:$0xff] %v1929
        %s2186 = sand.u32 %s52, 1
        %s2187 = scalar_lea.sflag [#allocation4], %s2186
        %s2188 = sand.u32 %s52, 1
        %s2189 = smul.addr %s2188, 2048
        %s2190 = scalar_lea.vmem [#allocation5], %s2189
        // Predicated region
        $region29: #{tpu_custom_call.1} parent=23 // pred_check
          %p2191 = pneg %p62
        $region30: #{tpu_custom_call.1} parent=23 // pred_check_branch
          %2193 = sbr.rel (%p2191) target = $region32
        $region31: #{tpu_custom_call.1} parent=23 // pred_region
          %s2194 = smul.u32 4, %s18
          %s2196 = ssub.s32 32768, 32768
          %2197 = vsyncadd %s2187, %s2196
          %s2198 = smul.addr %s2194, 64
          %s2199 = smul.addr %s2198, 128
          %s2200 = scalar_lea.hbm %s1, %s2199
          %s2201 = sshll.u32 %s2190, 4
          %s2202 = int_to_ptr.vmem [resolvable:$true] %s2201
          %2207 = dma.vmem_to_hbm [thread:$0]  %s2202, 32768, %s2200, %s2187, 8192, 8192, 512
        $region32: #{tpu_custom_call.1} parent=23 // pred_fallthru
          _
      $region24: #{tpu_custom_call.1} parent=5 // pred_fallthru
        _
      %p2208 = scmp.le.s32.totalorder 2, %s13
      // Predicated region
      $region33: #{tpu_custom_call.1} parent=5 // pred_check
        %p2209 = pneg %p2208
      $region34: #{tpu_custom_call.1} parent=5 // pred_check_branch
        %2211 = sbr.rel (%p2209) target = $region36
      $region35: #{tpu_custom_call.1} parent=5 // pred_region
        %s2212 = ssub.s32 %s13, 2
        // Predicated region
        $region37: #{tpu_custom_call.1} parent=35 // pred_check
          %p2213 = pneg %p68
        $region38: #{tpu_custom_call.1} parent=35 // pred_check_branch
          %2215 = sbr.rel (%p2213) target = $region40
        $region39: #{tpu_custom_call.1} parent=35 // pred_region
          %s2216 = sand.u32 %s53, 1
          %s2217 = scalar_lea.sflag [#allocation4], %s2216
          %s2218 = sand.u32 %s53, 1
          %s2219 = smul.addr %s2218, 2048
          %s2220 = scalar_lea.vmem [#allocation5], %s2219
          %2221 = dma.done %s2217, 32768
        $region40: #{tpu_custom_call.1} parent=35 // pred_fallthru
          _
      $region36: #{tpu_custom_call.1} parent=5 // pred_fallthru
        _
    $region6: #{tpu_custom_call.1} parent=1 // loop_footer
      %s17 = sadd.s32 1, %s13
    $region7: #{tpu_custom_call.1} parent=1 // loop_footer_branch
      %12 = sbr.rel target = $region3
    $region8: #{tpu_custom_call.1} parent=1 // loop_exit
      _
    %2222 = vsyncpa [#allocation3], 1
    %s2223 = scalar_lea.sflag [#allocation3], 1
    %2224 = vsyncpa %s2223, 1
    %2225 = vsyncpa [#allocation4], 1
    %s2226 = scalar_lea.sflag [#allocation4], 1
    %2227 = vsyncpa %s2226, 1

</llo_original>
